<compile_context>
chip_gen: v6e
topology: v6e:2x2x1
jax: 0.10.0
libtpu: 0.0.40
codegen_flags: <defaults>
</compile_context>

<pallas_src>
import jax
import jax.numpy as jnp
import numpy as np
from jax.experimental import pallas as pl
from jax.experimental.pallas import tpu as pltpu

# ---- module hyper-parameters (mirror LSTMClassifier.__init__) ----
CONV_OUT = 64
KSIZE = 5
STRIDE = 2


# =====================================================================
# Pallas kernel: single grid point, everything resident in VMEM.
# =====================================================================
def lstm_classifier_kernel(x_ref, wc_ref, bc_ref, wih_ref, whh_ref, bg_ref,
                           wl_ref, bl_ref, out_ref):
    x = x_ref[...]                                   # (B, T, C) f32
    B, T, C = x.shape
    H4 = whh_ref.shape[1]                            # 4 * hidden
    H = H4 // 4
    L = (T - KSIZE) // STRIDE + 1                    # conv output length

    # F.normalize(input): L2 normalize along dim=1 (T axis), eps=1e-12.
    # rsqrt keeps the divide on the EUP slot.
    sq = jnp.sum(x * x, axis=1, keepdims=True)
    xn = x * jax.lax.rsqrt(jnp.maximum(sq, 1e-24))

    # --- Conv1d(k=5, s=2) as a single im2col matmul ---------------------
    # patches[b + l*B, k*C + c] = xn[b, STRIDE*l + k, c]
    patch_rows = []
    for l in range(L):
        taps = [xn[:, STRIDE * l + k, :] for k in range(KSIZE)]      # (B, C) each
        patch_rows.append(jnp.concatenate(taps, axis=-1))            # (B, K*C)
    patches = jnp.concatenate(patch_rows, axis=0)                    # (L*B, K*C)

    e_all = jnp.maximum(
        jnp.dot(patches, wc_ref[...], preferred_element_type=jnp.float32)
        + bc_ref[...], 0.0)                                          # (L*B, 64)

    # --- hoisted input-gate contribution: one matmul for all timesteps ---
    pre = jnp.dot(e_all, wih_ref[...],
                  preferred_element_type=jnp.float32)                # (L*B, 4H)

    # --- serial LSTMCell recurrence (one fused (B,4H) matmul per step) ---
    whh = whh_ref[...]                                               # (H, 4H)
    bg = bg_ref[...]                                                 # (1, 4H)
    h = jnp.zeros((B, H), jnp.float32)
    c = jnp.zeros((B, H), jnp.float32)
    for l in range(L):
        g = (pre[l * B:(l + 1) * B, :]
             + jnp.dot(h, whh, preferred_element_type=jnp.float32)
             + bg)                                                   # (B, 4H)
        # PyTorch LSTMCell gate order: i, f, g, o
        gi = jax.nn.sigmoid(g[:, 0:H])
        gf = jax.nn.sigmoid(g[:, H:2 * H])
        gg = jnp.tanh(g[:, 2 * H:3 * H])
        go = jax.nn.sigmoid(g[:, 3 * H:4 * H])
        c = gf * c + gi * gg
        h = go * jnp.tanh(c)

    # --- final Linear(hidden_size -> output_size) ---
    out_ref[...] = (jnp.dot(h, wl_ref[...], preferred_element_type=jnp.float32)
                    + bl_ref[...])


def lstm_classifier_forward(x, params):
    """Wrapper: single-block pallas_call (all operands fit in VMEM)."""
    wc, bc, wih, whh, bg, wl, bl = params
    B = x.shape[0]
    O = wl.shape[1]

    def fullspec(shape):
        nd = len(shape)
        return pl.BlockSpec(shape, lambda i, _nd=nd: (0,) * _nd)

    return pl.pallas_call(
        lstm_classifier_kernel,
        out_shape=jax.ShapeDtypeStruct((B, O), jnp.float32),
        grid=(1,),
        in_specs=[fullspec(a.shape) for a in (x, wc, bc, wih, whh, bg, wl, bl)],
        out_specs=fullspec((B, O)),
        compiler_params=pltpu.CompilerParams(dimension_semantics=("arbitrary",)),
    )(x, wc, bc, wih, whh, bg, wl, bl)


# =====================================================================
# Pure-JAX reference (mirrors the PyTorch 'plain' forward) for checking.
# =====================================================================
def reference_forward(x, conv_w, conv_b, w_ih, w_hh, b_ih, b_hh, w_lin, b_lin, H):
    nrm = jnp.sqrt(jnp.sum(x * x, axis=1, keepdims=True))
    xn = x / jnp.maximum(nrm, 1e-12)
    xcf = jnp.transpose(xn, (0, 2, 1))                         # (B, C, T)  NCH
    conv = jax.lax.conv_general_dilated(
        xcf, conv_w, window_strides=(STRIDE,), padding="VALID",
        dimension_numbers=("NCH", "OIH", "NCH")) + conv_b[None, :, None]
    e = jnp.maximum(jnp.transpose(conv, (2, 0, 1)), 0.0)       # (L, B, 64)
    B = x.shape[0]
    h = jnp.zeros((B, H), jnp.float32)
    c = jnp.zeros((B, H), jnp.float32)
    for t in range(e.shape[0]):
        g = e[t] @ w_ih.T + b_ih + h @ w_hh.T + b_hh
        gi, gf, gg, go = jnp.split(g, 4, axis=1)
        gi = jax.nn.sigmoid(gi); gf = jax.nn.sigmoid(gf)
        gg = jnp.tanh(gg); go = jax.nn.sigmoid(go)
        c = gf * c + gi * gg
        h = go * jnp.tanh(c)
    return h @ w_lin.T + b_lin


if __name__ == "__main__":
    # Small shapes consistent with the module's forward.
    B, T, C_IN = 2, 16, 4          # batch, sequence length, input_size
    H, O = 32, 4                   # hidden_size, output_size

    key = jax.random.PRNGKey(0)
    k = jax.random.split(key, 8)

    # Deterministic synthetic parameters (PyTorch layouts).
    conv_w = jax.random.uniform(k[0], (CONV_OUT, C_IN, KSIZE), jnp.float32, -0.3, 0.3)
    conv_b = jax.random.uniform(k[1], (CONV_OUT,), jnp.float32, -0.3, 0.3)
    w_ih   = jax.random.uniform(k[2], (4 * H, CONV_OUT), jnp.float32, -0.15, 0.15)
    w_hh   = jax.random.uniform(k[3], (4 * H, H), jnp.float32, -0.15, 0.15)
    b_ih   = jax.random.uniform(k[4], (4 * H,), jnp.float32, -0.15, 0.15)
    b_hh   = jax.random.uniform(k[5], (4 * H,), jnp.float32, -0.15, 0.15)
    w_lin  = jax.random.uniform(k[6], (O, H), jnp.float32, -0.2, 0.2)
    b_lin  = jax.random.uniform(k[7], (O,), jnp.float32, -0.2, 0.2)

    # Kernel-friendly, lane-dense, gate-fused parameter forms.
    # im2col conv weight: wc[k*C + c, o] = conv_w[o, c, k]
    wc  = jnp.transpose(conv_w, (2, 1, 0)).reshape(KSIZE * C_IN, CONV_OUT)  # (20, 64)
    bc  = conv_b.reshape(1, CONV_OUT)                                       # (1, 64)
    wih = w_ih.T                                                            # (64, 4H)=(64,128)
    whh = w_hh.T                                                            # (H, 4H)=(32,128)
    bg  = (b_ih + b_hh).reshape(1, 4 * H)                                   # (1, 128)
    wl  = w_lin.T                                                           # (H, O)
    bl  = b_lin.reshape(1, O)                                               # (1, O)
    params = (wc, bc, wih, whh, bg, wl, bl)

    # Deterministic input. (`r` is only used in the 'AdvLSTM' mode; 'plain'
    # mode ignores it, so it is not passed to the kernel.)
    x = jax.random.normal(jax.random.PRNGKey(0), (B, T, C_IN), jnp.float32)

    out = lstm_classifier_forward(x, params)
    out = jax.block_until_ready(out)

    ref = reference_forward(x, conv_w, conv_b, w_ih, w_hh, b_ih, b_hh,
                            w_lin, b_lin, H)
    ref = jax.block_until_ready(ref)

    assert out.shape == (B, O)
    if not np.allclose(np.asarray(out), np.asarray(ref), rtol=1e-3, atol=1e-3):
        raise AssertionError(
            f"mismatch vs reference, max abs diff = "
            f"{float(np.max(np.abs(np.asarray(out) - np.asarray(ref))))}")

    print("KERNEL_OK")
</pallas_src>

<mosaic_0001>
module attributes {stable_mosaic.version = 11 : i64} {
  func.func @lstm_classifier_kernel(%arg0: i32, %arg1: memref<2x16x4xf32, #tpu.memory_space<vmem>>, %arg2: memref<20x64xf32, #tpu.memory_space<vmem>>, %arg3: memref<1x64xf32, #tpu.memory_space<vmem>>, %arg4: memref<64x128xf32, #tpu.memory_space<vmem>>, %arg5: memref<32x128xf32, #tpu.memory_space<vmem>>, %arg6: memref<1x128xf32, #tpu.memory_space<vmem>>, %arg7: memref<32x4xf32, #tpu.memory_space<vmem>>, %arg8: memref<1x4xf32, #tpu.memory_space<vmem>>, %arg9: memref<2x4xf32, #tpu.memory_space<vmem>>) attributes {dimension_semantics = [#tpu.dimension_semantics<arbitrary>], iteration_bounds = array<i64: 1>, scalar_prefetch = 0 : i64, scratch_operands = 0 : i64, tpu.core_type = #tpu.core_type<tc>, window_params = [{pipeline_mode = #tpu.pipeline_mode<synchronous>, transform_indices = @transform_0, window_bounds = array<i64: 2, 16, 4>}, {pipeline_mode = #tpu.pipeline_mode<synchronous>, transform_indices = @transform_1, window_bounds = array<i64: 20, 64>}, {pipeline_mode = #tpu.pipeline_mode<synchronous>, transform_indices = @transform_2, window_bounds = array<i64: 1, 64>}, {pipeline_mode = #tpu.pipeline_mode<synchronous>, transform_indices = @transform_3, window_bounds = array<i64: 64, 128>}, {pipeline_mode = #tpu.pipeline_mode<synchronous>, transform_indices = @transform_4, window_bounds = array<i64: 32, 128>}, {pipeline_mode = #tpu.pipeline_mode<synchronous>, transform_indices = @transform_5, window_bounds = array<i64: 1, 128>}, {pipeline_mode = #tpu.pipeline_mode<synchronous>, transform_indices = @transform_6, window_bounds = array<i64: 32, 4>}, {pipeline_mode = #tpu.pipeline_mode<synchronous>, transform_indices = @transform_7, window_bounds = array<i64: 1, 4>}, {pipeline_mode = #tpu.pipeline_mode<synchronous>, transform_indices = @transform_8, window_bounds = array<i64: 2, 4>}]} {
    %c0 = arith.constant 0 : index
    %c0_0 = arith.constant 0 : index
    %c0_1 = arith.constant 0 : index
    %0 = vector.load %arg1[%c0, %c0_0, %c0_1] : memref<2x16x4xf32, #tpu.memory_space<vmem>>, vector<2x16x4xf32>
    %1 = arith.mulf %0, %0 : vector<2x16x4xf32>
    %cst = arith.constant dense<0.000000e+00> : vector<2x4xf32>
    %2 = vector.multi_reduction <add>, %1, %cst [1] : vector<2x16x4xf32> to vector<2x4xf32>
    %3 = vector.shape_cast %2 : vector<2x4xf32> to vector<2x1x4xf32>
    %cst_2 = arith.constant 1.000000e-24 : f32
    %4 = vector.broadcast %cst_2 : f32 to vector<2x1x4xf32>
    %5 = arith.maximumf %3, %4 : vector<2x1x4xf32>
    %6 = math.rsqrt %5 : vector<2x1x4xf32>
    %7 = vector.broadcast %6 : vector<2x1x4xf32> to vector<2x16x4xf32>
    %8 = arith.mulf %0, %7 : vector<2x16x4xf32>
    %9 = vector.extract_strided_slice %8 {offsets = [0, 0, 0], sizes = [2, 1, 4], strides = [1, 1, 1]} : vector<2x16x4xf32> to vector<2x1x4xf32>
    %10 = vector.shape_cast %9 : vector<2x1x4xf32> to vector<2x4xf32>
    %11 = vector.extract_strided_slice %8 {offsets = [0, 1, 0], sizes = [2, 1, 4], strides = [1, 1, 1]} : vector<2x16x4xf32> to vector<2x1x4xf32>
    %12 = vector.shape_cast %11 : vector<2x1x4xf32> to vector<2x4xf32>
    %13 = vector.extract_strided_slice %8 {offsets = [0, 2, 0], sizes = [2, 1, 4], strides = [1, 1, 1]} : vector<2x16x4xf32> to vector<2x1x4xf32>
    %14 = vector.shape_cast %13 : vector<2x1x4xf32> to vector<2x4xf32>
    %15 = vector.extract_strided_slice %8 {offsets = [0, 3, 0], sizes = [2, 1, 4], strides = [1, 1, 1]} : vector<2x16x4xf32> to vector<2x1x4xf32>
    %16 = vector.shape_cast %15 : vector<2x1x4xf32> to vector<2x4xf32>
    %17 = vector.extract_strided_slice %8 {offsets = [0, 4, 0], sizes = [2, 1, 4], strides = [1, 1, 1]} : vector<2x16x4xf32> to vector<2x1x4xf32>
    %18 = vector.shape_cast %17 : vector<2x1x4xf32> to vector<2x4xf32>
    %19 = tpu.concatenate %10, %12, %14, %16, %18 in 1 : vector<2x4xf32>, vector<2x4xf32>, vector<2x4xf32>, vector<2x4xf32>, vector<2x4xf32> -> vector<2x20xf32>
    %20 = vector.extract_strided_slice %8 {offsets = [0, 2, 0], sizes = [2, 1, 4], strides = [1, 1, 1]} : vector<2x16x4xf32> to vector<2x1x4xf32>
    %21 = vector.shape_cast %20 : vector<2x1x4xf32> to vector<2x4xf32>
    %22 = vector.extract_strided_slice %8 {offsets = [0, 3, 0], sizes = [2, 1, 4], strides = [1, 1, 1]} : vector<2x16x4xf32> to vector<2x1x4xf32>
    %23 = vector.shape_cast %22 : vector<2x1x4xf32> to vector<2x4xf32>
    %24 = vector.extract_strided_slice %8 {offsets = [0, 4, 0], sizes = [2, 1, 4], strides = [1, 1, 1]} : vector<2x16x4xf32> to vector<2x1x4xf32>
    %25 = vector.shape_cast %24 : vector<2x1x4xf32> to vector<2x4xf32>
    %26 = vector.extract_strided_slice %8 {offsets = [0, 5, 0], sizes = [2, 1, 4], strides = [1, 1, 1]} : vector<2x16x4xf32> to vector<2x1x4xf32>
    %27 = vector.shape_cast %26 : vector<2x1x4xf32> to vector<2x4xf32>
    %28 = vector.extract_strided_slice %8 {offsets = [0, 6, 0], sizes = [2, 1, 4], strides = [1, 1, 1]} : vector<2x16x4xf32> to vector<2x1x4xf32>
    %29 = vector.shape_cast %28 : vector<2x1x4xf32> to vector<2x4xf32>
    %30 = tpu.concatenate %21, %23, %25, %27, %29 in 1 : vector<2x4xf32>, vector<2x4xf32>, vector<2x4xf32>, vector<2x4xf32>, vector<2x4xf32> -> vector<2x20xf32>
    %31 = vector.extract_strided_slice %8 {offsets = [0, 4, 0], sizes = [2, 1, 4], strides = [1, 1, 1]} : vector<2x16x4xf32> to vector<2x1x4xf32>
    %32 = vector.shape_cast %31 : vector<2x1x4xf32> to vector<2x4xf32>
    %33 = vector.extract_strided_slice %8 {offsets = [0, 5, 0], sizes = [2, 1, 4], strides = [1, 1, 1]} : vector<2x16x4xf32> to vector<2x1x4xf32>
    %34 = vector.shape_cast %33 : vector<2x1x4xf32> to vector<2x4xf32>
    %35 = vector.extract_strided_slice %8 {offsets = [0, 6, 0], sizes = [2, 1, 4], strides = [1, 1, 1]} : vector<2x16x4xf32> to vector<2x1x4xf32>
    %36 = vector.shape_cast %35 : vector<2x1x4xf32> to vector<2x4xf32>
    %37 = vector.extract_strided_slice %8 {offsets = [0, 7, 0], sizes = [2, 1, 4], strides = [1, 1, 1]} : vector<2x16x4xf32> to vector<2x1x4xf32>
    %38 = vector.shape_cast %37 : vector<2x1x4xf32> to vector<2x4xf32>
    %39 = vector.extract_strided_slice %8 {offsets = [0, 8, 0], sizes = [2, 1, 4], strides = [1, 1, 1]} : vector<2x16x4xf32> to vector<2x1x4xf32>
    %40 = vector.shape_cast %39 : vector<2x1x4xf32> to vector<2x4xf32>
    %41 = tpu.concatenate %32, %34, %36, %38, %40 in 1 : vector<2x4xf32>, vector<2x4xf32>, vector<2x4xf32>, vector<2x4xf32>, vector<2x4xf32> -> vector<2x20xf32>
    %42 = vector.extract_strided_slice %8 {offsets = [0, 6, 0], sizes = [2, 1, 4], strides = [1, 1, 1]} : vector<2x16x4xf32> to vector<2x1x4xf32>
    %43 = vector.shape_cast %42 : vector<2x1x4xf32> to vector<2x4xf32>
    %44 = vector.extract_strided_slice %8 {offsets = [0, 7, 0], sizes = [2, 1, 4], strides = [1, 1, 1]} : vector<2x16x4xf32> to vector<2x1x4xf32>
    %45 = vector.shape_cast %44 : vector<2x1x4xf32> to vector<2x4xf32>
    %46 = vector.extract_strided_slice %8 {offsets = [0, 8, 0], sizes = [2, 1, 4], strides = [1, 1, 1]} : vector<2x16x4xf32> to vector<2x1x4xf32>
    %47 = vector.shape_cast %46 : vector<2x1x4xf32> to vector<2x4xf32>
    %48 = vector.extract_strided_slice %8 {offsets = [0, 9, 0], sizes = [2, 1, 4], strides = [1, 1, 1]} : vector<2x16x4xf32> to vector<2x1x4xf32>
    %49 = vector.shape_cast %48 : vector<2x1x4xf32> to vector<2x4xf32>
    %50 = vector.extract_strided_slice %8 {offsets = [0, 10, 0], sizes = [2, 1, 4], strides = [1, 1, 1]} : vector<2x16x4xf32> to vector<2x1x4xf32>
    %51 = vector.shape_cast %50 : vector<2x1x4xf32> to vector<2x4xf32>
    %52 = tpu.concatenate %43, %45, %47, %49, %51 in 1 : vector<2x4xf32>, vector<2x4xf32>, vector<2x4xf32>, vector<2x4xf32>, vector<2x4xf32> -> vector<2x20xf32>
    %53 = vector.extract_strided_slice %8 {offsets = [0, 8, 0], sizes = [2, 1, 4], strides = [1, 1, 1]} : vector<2x16x4xf32> to vector<2x1x4xf32>
    %54 = vector.shape_cast %53 : vector<2x1x4xf32> to vector<2x4xf32>
    %55 = vector.extract_strided_slice %8 {offsets = [0, 9, 0], sizes = [2, 1, 4], strides = [1, 1, 1]} : vector<2x16x4xf32> to vector<2x1x4xf32>
    %56 = vector.shape_cast %55 : vector<2x1x4xf32> to vector<2x4xf32>
    %57 = vector.extract_strided_slice %8 {offsets = [0, 10, 0], sizes = [2, 1, 4], strides = [1, 1, 1]} : vector<2x16x4xf32> to vector<2x1x4xf32>
    %58 = vector.shape_cast %57 : vector<2x1x4xf32> to vector<2x4xf32>
    %59 = vector.extract_strided_slice %8 {offsets = [0, 11, 0], sizes = [2, 1, 4], strides = [1, 1, 1]} : vector<2x16x4xf32> to vector<2x1x4xf32>
    %60 = vector.shape_cast %59 : vector<2x1x4xf32> to vector<2x4xf32>
    %61 = vector.extract_strided_slice %8 {offsets = [0, 12, 0], sizes = [2, 1, 4], strides = [1, 1, 1]} : vector<2x16x4xf32> to vector<2x1x4xf32>
    %62 = vector.shape_cast %61 : vector<2x1x4xf32> to vector<2x4xf32>
    %63 = tpu.concatenate %54, %56, %58, %60, %62 in 1 : vector<2x4xf32>, vector<2x4xf32>, vector<2x4xf32>, vector<2x4xf32>, vector<2x4xf32> -> vector<2x20xf32>
    %64 = vector.extract_strided_slice %8 {offsets = [0, 10, 0], sizes = [2, 1, 4], strides = [1, 1, 1]} : vector<2x16x4xf32> to vector<2x1x4xf32>
    %65 = vector.shape_cast %64 : vector<2x1x4xf32> to vector<2x4xf32>
    %66 = vector.extract_strided_slice %8 {offsets = [0, 11, 0], sizes = [2, 1, 4], strides = [1, 1, 1]} : vector<2x16x4xf32> to vector<2x1x4xf32>
    %67 = vector.shape_cast %66 : vector<2x1x4xf32> to vector<2x4xf32>
    %68 = vector.extract_strided_slice %8 {offsets = [0, 12, 0], sizes = [2, 1, 4], strides = [1, 1, 1]} : vector<2x16x4xf32> to vector<2x1x4xf32>
    %69 = vector.shape_cast %68 : vector<2x1x4xf32> to vector<2x4xf32>
    %70 = vector.extract_strided_slice %8 {offsets = [0, 13, 0], sizes = [2, 1, 4], strides = [1, 1, 1]} : vector<2x16x4xf32> to vector<2x1x4xf32>
    %71 = vector.shape_cast %70 : vector<2x1x4xf32> to vector<2x4xf32>
    %72 = vector.extract_strided_slice %8 {offsets = [0, 14, 0], sizes = [2, 1, 4], strides = [1, 1, 1]} : vector<2x16x4xf32> to vector<2x1x4xf32>
    %73 = vector.shape_cast %72 : vector<2x1x4xf32> to vector<2x4xf32>
    %74 = tpu.concatenate %65, %67, %69, %71, %73 in 1 : vector<2x4xf32>, vector<2x4xf32>, vector<2x4xf32>, vector<2x4xf32>, vector<2x4xf32> -> vector<2x20xf32>
    %75 = tpu.concatenate %19, %30, %41, %52, %63, %74 in 0 : vector<2x20xf32>, vector<2x20xf32>, vector<2x20xf32>, vector<2x20xf32>, vector<2x20xf32>, vector<2x20xf32> -> vector<12x20xf32>
    %c0_3 = arith.constant 0 : index
    %c0_4 = arith.constant 0 : index
    %76 = vector.load %arg2[%c0_3, %c0_4] : memref<20x64xf32, #tpu.memory_space<vmem>>, vector<20x64xf32>
    %cst_5 = arith.constant dense<0.000000e+00> : vector<12x64xf32>
    %77 = tpu.matmul %75, %76, %cst_5 {dimension_numbers = #tpu.dot_dimension_numbers<[1], [0], [0], [1], [0, 0, 1, 1], [], []>} : vector<12x20xf32>, vector<20x64xf32>, vector<12x64xf32> -> vector<12x64xf32>
    %c0_6 = arith.constant 0 : index
    %c0_7 = arith.constant 0 : index
    %78 = vector.load %arg3[%c0_6, %c0_7] : memref<1x64xf32, #tpu.memory_space<vmem>>, vector<1x64xf32>
    %79 = vector.broadcast %78 : vector<1x64xf32> to vector<12x64xf32>
    %80 = arith.addf %77, %79 : vector<12x64xf32>
    %cst_8 = arith.constant 0.000000e+00 : f32
    %81 = vector.broadcast %cst_8 : f32 to vector<12x64xf32>
    %82 = arith.maximumf %80, %81 : vector<12x64xf32>
    %c0_9 = arith.constant 0 : index
    %c0_10 = arith.constant 0 : index
    %83 = vector.load %arg4[%c0_9, %c0_10] : memref<64x128xf32, #tpu.memory_space<vmem>>, vector<64x128xf32>
    %cst_11 = arith.constant dense<0.000000e+00> : vector<12x128xf32>
    %84 = tpu.matmul %82, %83, %cst_11 {dimension_numbers = #tpu.dot_dimension_numbers<[1], [0], [0], [1], [0, 0, 1, 1], [], []>} : vector<12x64xf32>, vector<64x128xf32>, vector<12x128xf32> -> vector<12x128xf32>
    %c0_12 = arith.constant 0 : index
    %c0_13 = arith.constant 0 : index
    %85 = vector.load %arg5[%c0_12, %c0_13] : memref<32x128xf32, #tpu.memory_space<vmem>>, vector<32x128xf32>
    %c0_14 = arith.constant 0 : index
    %c0_15 = arith.constant 0 : index
    %86 = vector.load %arg6[%c0_14, %c0_15] : memref<1x128xf32, #tpu.memory_space<vmem>>, vector<1x128xf32>
    %cst_16 = arith.constant 0.000000e+00 : f32
    %87 = vector.broadcast %cst_16 : f32 to vector<2x32xf32>
    %cst_17 = arith.constant 0.000000e+00 : f32
    %88 = vector.broadcast %cst_17 : f32 to vector<2x32xf32>
    %89 = vector.extract_strided_slice %84 {offsets = [0, 0], sizes = [2, 128], strides = [1, 1]} : vector<12x128xf32> to vector<2x128xf32>
    %cst_18 = arith.constant dense<0.000000e+00> : vector<2x128xf32>
    %90 = tpu.matmul %87, %85, %cst_18 {dimension_numbers = #tpu.dot_dimension_numbers<[1], [0], [0], [1], [0, 0, 1, 1], [], []>} : vector<2x32xf32>, vector<32x128xf32>, vector<2x128xf32> -> vector<2x128xf32>
    %91 = arith.addf %89, %90 : vector<2x128xf32>
    %92 = vector.broadcast %86 : vector<1x128xf32> to vector<2x128xf32>
    %93 = arith.addf %91, %92 : vector<2x128xf32>
    %94 = vector.extract_strided_slice %93 {offsets = [0, 0], sizes = [2, 32], strides = [1, 1]} : vector<2x128xf32> to vector<2x32xf32>
    %95 = arith.negf %94 : vector<2x32xf32>
    %96 = math.exp %95 : vector<2x32xf32>
    %cst_19 = arith.constant 1.000000e+00 : f32
    %97 = vector.broadcast %cst_19 : f32 to vector<2x32xf32>
    %98 = arith.addf %97, %96 : vector<2x32xf32>
    %99 = arith.divf %97, %98 : vector<2x32xf32>
    %100 = vector.extract_strided_slice %93 {offsets = [0, 32], sizes = [2, 32], strides = [1, 1]} : vector<2x128xf32> to vector<2x32xf32>
    %101 = arith.negf %100 : vector<2x32xf32>
    %102 = math.exp %101 : vector<2x32xf32>
    %cst_20 = arith.constant 1.000000e+00 : f32
    %103 = vector.broadcast %cst_20 : f32 to vector<2x32xf32>
    %104 = arith.addf %103, %102 : vector<2x32xf32>
    %105 = arith.divf %103, %104 : vector<2x32xf32>
    %106 = vector.extract_strided_slice %93 {offsets = [0, 64], sizes = [2, 32], strides = [1, 1]} : vector<2x128xf32> to vector<2x32xf32>
    %107 = math.tanh %106 : vector<2x32xf32>
    %108 = vector.extract_strided_slice %93 {offsets = [0, 96], sizes = [2, 32], strides = [1, 1]} : vector<2x128xf32> to vector<2x32xf32>
    %109 = arith.negf %108 : vector<2x32xf32>
    %110 = math.exp %109 : vector<2x32xf32>
    %cst_21 = arith.constant 1.000000e+00 : f32
    %111 = vector.broadcast %cst_21 : f32 to vector<2x32xf32>
    %112 = arith.addf %111, %110 : vector<2x32xf32>
    %113 = arith.divf %111, %112 : vector<2x32xf32>
    %114 = arith.mulf %105, %88 : vector<2x32xf32>
    %115 = arith.mulf %99, %107 : vector<2x32xf32>
    %116 = arith.addf %114, %115 : vector<2x32xf32>
    %117 = math.tanh %116 : vector<2x32xf32>
    %118 = arith.mulf %113, %117 : vector<2x32xf32>
    %119 = vector.extract_strided_slice %84 {offsets = [2, 0], sizes = [2, 128], strides = [1, 1]} : vector<12x128xf32> to vector<2x128xf32>
    %cst_22 = arith.constant dense<0.000000e+00> : vector<2x128xf32>
    %120 = tpu.matmul %118, %85, %cst_22 {dimension_numbers = #tpu.dot_dimension_numbers<[1], [0], [0], [1], [0, 0, 1, 1], [], []>} : vector<2x32xf32>, vector<32x128xf32>, vector<2x128xf32> -> vector<2x128xf32>
    %121 = arith.addf %119, %120 : vector<2x128xf32>
    %122 = vector.broadcast %86 : vector<1x128xf32> to vector<2x128xf32>
    %123 = arith.addf %121, %122 : vector<2x128xf32>
    %124 = vector.extract_strided_slice %123 {offsets = [0, 0], sizes = [2, 32], strides = [1, 1]} : vector<2x128xf32> to vector<2x32xf32>
    %125 = arith.negf %124 : vector<2x32xf32>
    %126 = math.exp %125 : vector<2x32xf32>
    %cst_23 = arith.constant 1.000000e+00 : f32
    %127 = vector.broadcast %cst_23 : f32 to vector<2x32xf32>
    %128 = arith.addf %127, %126 : vector<2x32xf32>
    %129 = arith.divf %127, %128 : vector<2x32xf32>
    %130 = vector.extract_strided_slice %123 {offsets = [0, 32], sizes = [2, 32], strides = [1, 1]} : vector<2x128xf32> to vector<2x32xf32>
    %131 = arith.negf %130 : vector<2x32xf32>
    %132 = math.exp %131 : vector<2x32xf32>
    %cst_24 = arith.constant 1.000000e+00 : f32
    %133 = vector.broadcast %cst_24 : f32 to vector<2x32xf32>
    %134 = arith.addf %133, %132 : vector<2x32xf32>
    %135 = arith.divf %133, %134 : vector<2x32xf32>
    %136 = vector.extract_strided_slice %123 {offsets = [0, 64], sizes = [2, 32], strides = [1, 1]} : vector<2x128xf32> to vector<2x32xf32>
    %137 = math.tanh %136 : vector<2x32xf32>
    %138 = vector.extract_strided_slice %123 {offsets = [0, 96], sizes = [2, 32], strides = [1, 1]} : vector<2x128xf32> to vector<2x32xf32>
    %139 = arith.negf %138 : vector<2x32xf32>
    %140 = math.exp %139 : vector<2x32xf32>
    %cst_25 = arith.constant 1.000000e+00 : f32
    %141 = vector.broadcast %cst_25 : f32 to vector<2x32xf32>
    %142 = arith.addf %141, %140 : vector<2x32xf32>
    %143 = arith.divf %141, %142 : vector<2x32xf32>
    %144 = arith.mulf %135, %116 : vector<2x32xf32>
    %145 = arith.mulf %129, %137 : vector<2x32xf32>
    %146 = arith.addf %144, %145 : vector<2x32xf32>
    %147 = math.tanh %146 : vector<2x32xf32>
    %148 = arith.mulf %143, %147 : vector<2x32xf32>
    %149 = vector.extract_strided_slice %84 {offsets = [4, 0], sizes = [2, 128], strides = [1, 1]} : vector<12x128xf32> to vector<2x128xf32>
    %cst_26 = arith.constant dense<0.000000e+00> : vector<2x128xf32>
    %150 = tpu.matmul %148, %85, %cst_26 {dimension_numbers = #tpu.dot_dimension_numbers<[1], [0], [0], [1], [0, 0, 1, 1], [], []>} : vector<2x32xf32>, vector<32x128xf32>, vector<2x128xf32> -> vector<2x128xf32>
    %151 = arith.addf %149, %150 : vector<2x128xf32>
    %152 = vector.broadcast %86 : vector<1x128xf32> to vector<2x128xf32>
    %153 = arith.addf %151, %152 : vector<2x128xf32>
    %154 = vector.extract_strided_slice %153 {offsets = [0, 0], sizes = [2, 32], strides = [1, 1]} : vector<2x128xf32> to vector<2x32xf32>
    %155 = arith.negf %154 : vector<2x32xf32>
    %156 = math.exp %155 : vector<2x32xf32>
    %cst_27 = arith.constant 1.000000e+00 : f32
    %157 = vector.broadcast %cst_27 : f32 to vector<2x32xf32>
    %158 = arith.addf %157, %156 : vector<2x32xf32>
    %159 = arith.divf %157, %158 : vector<2x32xf32>
    %160 = vector.extract_strided_slice %153 {offsets = [0, 32], sizes = [2, 32], strides = [1, 1]} : vector<2x128xf32> to vector<2x32xf32>
    %161 = arith.negf %160 : vector<2x32xf32>
    %162 = math.exp %161 : vector<2x32xf32>
    %cst_28 = arith.constant 1.000000e+00 : f32
    %163 = vector.broadcast %cst_28 : f32 to vector<2x32xf32>
    %164 = arith.addf %163, %162 : vector<2x32xf32>
    %165 = arith.divf %163, %164 : vector<2x32xf32>
    %166 = vector.extract_strided_slice %153 {offsets = [0, 64], sizes = [2, 32], strides = [1, 1]} : vector<2x128xf32> to vector<2x32xf32>
    %167 = math.tanh %166 : vector<2x32xf32>
    %168 = vector.extract_strided_slice %153 {offsets = [0, 96], sizes = [2, 32], strides = [1, 1]} : vector<2x128xf32> to vector<2x32xf32>
    %169 = arith.negf %168 : vector<2x32xf32>
    %170 = math.exp %169 : vector<2x32xf32>
    %cst_29 = arith.constant 1.000000e+00 : f32
    %171 = vector.broadcast %cst_29 : f32 to vector<2x32xf32>
    %172 = arith.addf %171, %170 : vector<2x32xf32>
    %173 = arith.divf %171, %172 : vector<2x32xf32>
    %174 = arith.mulf %165, %146 : vector<2x32xf32>
    %175 = arith.mulf %159, %167 : vector<2x32xf32>
    %176 = arith.addf %174, %175 : vector<2x32xf32>
    %177 = math.tanh %176 : vector<2x32xf32>
    %178 = arith.mulf %173, %177 : vector<2x32xf32>
    %179 = vector.extract_strided_slice %84 {offsets = [6, 0], sizes = [2, 128], strides = [1, 1]} : vector<12x128xf32> to vector<2x128xf32>
    %cst_30 = arith.constant dense<0.000000e+00> : vector<2x128xf32>
    %180 = tpu.matmul %178, %85, %cst_30 {dimension_numbers = #tpu.dot_dimension_numbers<[1], [0], [0], [1], [0, 0, 1, 1], [], []>} : vector<2x32xf32>, vector<32x128xf32>, vector<2x128xf32> -> vector<2x128xf32>
    %181 = arith.addf %179, %180 : vector<2x128xf32>
    %182 = vector.broadcast %86 : vector<1x128xf32> to vector<2x128xf32>
    %183 = arith.addf %181, %182 : vector<2x128xf32>
    %184 = vector.extract_strided_slice %183 {offsets = [0, 0], sizes = [2, 32], strides = [1, 1]} : vector<2x128xf32> to vector<2x32xf32>
    %185 = arith.negf %184 : vector<2x32xf32>
    %186 = math.exp %185 : vector<2x32xf32>
    %cst_31 = arith.constant 1.000000e+00 : f32
    %187 = vector.broadcast %cst_31 : f32 to vector<2x32xf32>
    %188 = arith.addf %187, %186 : vector<2x32xf32>
    %189 = arith.divf %187, %188 : vector<2x32xf32>
    %190 = vector.extract_strided_slice %183 {offsets = [0, 32], sizes = [2, 32], strides = [1, 1]} : vector<2x128xf32> to vector<2x32xf32>
    %191 = arith.negf %190 : vector<2x32xf32>
    %192 = math.exp %191 : vector<2x32xf32>
    %cst_32 = arith.constant 1.000000e+00 : f32
    %193 = vector.broadcast %cst_32 : f32 to vector<2x32xf32>
    %194 = arith.addf %193, %192 : vector<2x32xf32>
    %195 = arith.divf %193, %194 : vector<2x32xf32>
    %196 = vector.extract_strided_slice %183 {offsets = [0, 64], sizes = [2, 32], strides = [1, 1]} : vector<2x128xf32> to vector<2x32xf32>
    %197 = math.tanh %196 : vector<2x32xf32>
    %198 = vector.extract_strided_slice %183 {offsets = [0, 96], sizes = [2, 32], strides = [1, 1]} : vector<2x128xf32> to vector<2x32xf32>
    %199 = arith.negf %198 : vector<2x32xf32>
    %200 = math.exp %199 : vector<2x32xf32>
    %cst_33 = arith.constant 1.000000e+00 : f32
    %201 = vector.broadcast %cst_33 : f32 to vector<2x32xf32>
    %202 = arith.addf %201, %200 : vector<2x32xf32>
    %203 = arith.divf %201, %202 : vector<2x32xf32>
    %204 = arith.mulf %195, %176 : vector<2x32xf32>
    %205 = arith.mulf %189, %197 : vector<2x32xf32>
    %206 = arith.addf %204, %205 : vector<2x32xf32>
    %207 = math.tanh %206 : vector<2x32xf32>
    %208 = arith.mulf %203, %207 : vector<2x32xf32>
    %209 = vector.extract_strided_slice %84 {offsets = [8, 0], sizes = [2, 128], strides = [1, 1]} : vector<12x128xf32> to vector<2x128xf32>
    %cst_34 = arith.constant dense<0.000000e+00> : vector<2x128xf32>
    %210 = tpu.matmul %208, %85, %cst_34 {dimension_numbers = #tpu.dot_dimension_numbers<[1], [0], [0], [1], [0, 0, 1, 1], [], []>} : vector<2x32xf32>, vector<32x128xf32>, vector<2x128xf32> -> vector<2x128xf32>
    %211 = arith.addf %209, %210 : vector<2x128xf32>
    %212 = vector.broadcast %86 : vector<1x128xf32> to vector<2x128xf32>
    %213 = arith.addf %211, %212 : vector<2x128xf32>
    %214 = vector.extract_strided_slice %213 {offsets = [0, 0], sizes = [2, 32], strides = [1, 1]} : vector<2x128xf32> to vector<2x32xf32>
    %215 = arith.negf %214 : vector<2x32xf32>
    %216 = math.exp %215 : vector<2x32xf32>
    %cst_35 = arith.constant 1.000000e+00 : f32
    %217 = vector.broadcast %cst_35 : f32 to vector<2x32xf32>
    %218 = arith.addf %217, %216 : vector<2x32xf32>
    %219 = arith.divf %217, %218 : vector<2x32xf32>
    %220 = vector.extract_strided_slice %213 {offsets = [0, 32], sizes = [2, 32], strides = [1, 1]} : vector<2x128xf32> to vector<2x32xf32>
    %221 = arith.negf %220 : vector<2x32xf32>
    %222 = math.exp %221 : vector<2x32xf32>
    %cst_36 = arith.constant 1.000000e+00 : f32
    %223 = vector.broadcast %cst_36 : f32 to vector<2x32xf32>
    %224 = arith.addf %223, %222 : vector<2x32xf32>
    %225 = arith.divf %223, %224 : vector<2x32xf32>
    %226 = vector.extract_strided_slice %213 {offsets = [0, 64], sizes = [2, 32], strides = [1, 1]} : vector<2x128xf32> to vector<2x32xf32>
    %227 = math.tanh %226 : vector<2x32xf32>
    %228 = vector.extract_strided_slice %213 {offsets = [0, 96], sizes = [2, 32], strides = [1, 1]} : vector<2x128xf32> to vector<2x32xf32>
    %229 = arith.negf %228 : vector<2x32xf32>
    %230 = math.exp %229 : vector<2x32xf32>
    %cst_37 = arith.constant 1.000000e+00 : f32
    %231 = vector.broadcast %cst_37 : f32 to vector<2x32xf32>
    %232 = arith.addf %231, %230 : vector<2x32xf32>
    %233 = arith.divf %231, %232 : vector<2x32xf32>
    %234 = arith.mulf %225, %206 : vector<2x32xf32>
    %235 = arith.mulf %219, %227 : vector<2x32xf32>
    %236 = arith.addf %234, %235 : vector<2x32xf32>
    %237 = math.tanh %236 : vector<2x32xf32>
    %238 = arith.mulf %233, %237 : vector<2x32xf32>
    %239 = vector.extract_strided_slice %84 {offsets = [10, 0], sizes = [2, 128], strides = [1, 1]} : vector<12x128xf32> to vector<2x128xf32>
    %cst_38 = arith.constant dense<0.000000e+00> : vector<2x128xf32>
    %240 = tpu.matmul %238, %85, %cst_38 {dimension_numbers = #tpu.dot_dimension_numbers<[1], [0], [0], [1], [0, 0, 1, 1], [], []>} : vector<2x32xf32>, vector<32x128xf32>, vector<2x128xf32> -> vector<2x128xf32>
    %241 = arith.addf %239, %240 : vector<2x128xf32>
    %242 = vector.broadcast %86 : vector<1x128xf32> to vector<2x128xf32>
    %243 = arith.addf %241, %242 : vector<2x128xf32>
    %244 = vector.extract_strided_slice %243 {offsets = [0, 0], sizes = [2, 32], strides = [1, 1]} : vector<2x128xf32> to vector<2x32xf32>
    %245 = arith.negf %244 : vector<2x32xf32>
    %246 = math.exp %245 : vector<2x32xf32>
    %cst_39 = arith.constant 1.000000e+00 : f32
    %247 = vector.broadcast %cst_39 : f32 to vector<2x32xf32>
    %248 = arith.addf %247, %246 : vector<2x32xf32>
    %249 = arith.divf %247, %248 : vector<2x32xf32>
    %250 = vector.extract_strided_slice %243 {offsets = [0, 32], sizes = [2, 32], strides = [1, 1]} : vector<2x128xf32> to vector<2x32xf32>
    %251 = arith.negf %250 : vector<2x32xf32>
    %252 = math.exp %251 : vector<2x32xf32>
    %cst_40 = arith.constant 1.000000e+00 : f32
    %253 = vector.broadcast %cst_40 : f32 to vector<2x32xf32>
    %254 = arith.addf %253, %252 : vector<2x32xf32>
    %255 = arith.divf %253, %254 : vector<2x32xf32>
    %256 = vector.extract_strided_slice %243 {offsets = [0, 64], sizes = [2, 32], strides = [1, 1]} : vector<2x128xf32> to vector<2x32xf32>
    %257 = math.tanh %256 : vector<2x32xf32>
    %258 = vector.extract_strided_slice %243 {offsets = [0, 96], sizes = [2, 32], strides = [1, 1]} : vector<2x128xf32> to vector<2x32xf32>
    %259 = arith.negf %258 : vector<2x32xf32>
    %260 = math.exp %259 : vector<2x32xf32>
    %cst_41 = arith.constant 1.000000e+00 : f32
    %261 = vector.broadcast %cst_41 : f32 to vector<2x32xf32>
    %262 = arith.addf %261, %260 : vector<2x32xf32>
    %263 = arith.divf %261, %262 : vector<2x32xf32>
    %264 = arith.mulf %255, %236 : vector<2x32xf32>
    %265 = arith.mulf %249, %257 : vector<2x32xf32>
    %266 = arith.addf %264, %265 : vector<2x32xf32>
    %267 = math.tanh %266 : vector<2x32xf32>
    %268 = arith.mulf %263, %267 : vector<2x32xf32>
    %c0_42 = arith.constant 0 : index
    %c0_43 = arith.constant 0 : index
    %269 = vector.load %arg7[%c0_42, %c0_43] : memref<32x4xf32, #tpu.memory_space<vmem>>, vector<32x4xf32>
    %cst_44 = arith.constant dense<0.000000e+00> : vector<2x4xf32>
    %270 = tpu.matmul %268, %269, %cst_44 {dimension_numbers = #tpu.dot_dimension_numbers<[1], [0], [0], [1], [0, 0, 1, 1], [], []>} : vector<2x32xf32>, vector<32x4xf32>, vector<2x4xf32> -> vector<2x4xf32>
    %c0_45 = arith.constant 0 : index
    %c0_46 = arith.constant 0 : index
    %271 = vector.load %arg8[%c0_45, %c0_46] : memref<1x4xf32, #tpu.memory_space<vmem>>, vector<1x4xf32>
    %272 = vector.broadcast %271 : vector<1x4xf32> to vector<2x4xf32>
    %273 = arith.addf %270, %272 : vector<2x4xf32>
    %c0_47 = arith.constant 0 : index
    %c0_48 = arith.constant 0 : index
    %274 = vector.load %arg9[%c0_47, %c0_48] : memref<2x4xf32, #tpu.memory_space<vmem>>, vector<2x4xf32>
    tpu.vector_store %arg9[%c0_47, %c0_48], %273 {strides = array<i32>} : memref<2x4xf32, #tpu.memory_space<vmem>>, vector<2x4xf32>,
    return
  }
  func.func @transform_0(%arg0: i32) -> (i32, i32, i32) {
    %c0_i32 = arith.constant 0 : i32
    %c0_i32_0 = arith.constant 0 : i32
    %c0_i32_1 = arith.constant 0 : i32
    %c0_i32_2 = arith.constant 0 : i32
    return %c0_i32, %c0_i32_0, %c0_i32_1 : i32, i32, i32
  }
  func.func @transform_1(%arg0: i32) -> (i32, i32) {
    %c0_i32 = arith.constant 0 : i32
    %c0_i32_0 = arith.constant 0 : i32
    %c0_i32_1 = arith.constant 0 : i32
    return %c0_i32, %c0_i32_0 : i32, i32
  }
  func.func @transform_2(%arg0: i32) -> (i32, i32) {
    %c0_i32 = arith.constant 0 : i32
    %c0_i32_0 = arith.constant 0 : i32
    %c0_i32_1 = arith.constant 0 : i32
    return %c0_i32, %c0_i32_0 : i32, i32
  }
  func.func @transform_3(%arg0: i32) -> (i32, i32) {
    %c0_i32 = arith.constant 0 : i32
    %c0_i32_0 = arith.constant 0 : i32
    %c0_i32_1 = arith.constant 0 : i32
    return %c0_i32, %c0_i32_0 : i32, i32
  }
  func.func @transform_4(%arg0: i32) -> (i32, i32) {
    %c0_i32 = arith.constant 0 : i32
    %c0_i32_0 = arith.constant 0 : i32
    %c0_i32_1 = arith.constant 0 : i32
    return %c0_i32, %c0_i32_0 : i32, i32
  }
  func.func @transform_5(%arg0: i32) -> (i32, i32) {
    %c0_i32 = arith.constant 0 : i32
    %c0_i32_0 = arith.constant 0 : i32
    %c0_i32_1 = arith.constant 0 : i32
    return %c0_i32, %c0_i32_0 : i32, i32
  }
  func.func @transform_6(%arg0: i32) -> (i32, i32) {
    %c0_i32 = arith.constant 0 : i32
    %c0_i32_0 = arith.constant 0 : i32
    %c0_i32_1 = arith.constant 0 : i32
    return %c0_i32, %c0_i32_0 : i32, i32
  }
  func.func @transform_7(%arg0: i32) -> (i32, i32) {
    %c0_i32 = arith.constant 0 : i32
    %c0_i32_0 = arith.constant 0 : i32
    %c0_i32_1 = arith.constant 0 : i32
    return %c0_i32, %c0_i32_0 : i32, i32
  }
  func.func @transform_8(%arg0: i32) -> (i32, i32) {
    %c0_i32 = arith.constant 0 : i32
    %c0_i32_0 = arith.constant 0 : i32
    %c0_i32_1 = arith.constant 0 : i32
    return %c0_i32, %c0_i32_0 : i32, i32
  }
}

</mosaic_0001>

<llo_original>
// kernel: tpu_custom_call.1
$region0: #{tpu_custom_call.1}
  #allocation0 [shape = 'u32[]', space=smem, size = 0x4, offset = 0x4, fixed_abs, tag = 'smem constant byte address 0x4 - core index']
  #allocation1 [shape = 'u32[144,128]{1,0:T(1,128)}', space=vmem, size = 0x12000, scoped, tag = 'internal scratch']
  %s0 = inlined_call_operand.vmem [shape: f32[2,16,4], index: 0, kind: input, shape index: {}]
  %s1 = inlined_call_operand.hbm [shape: f32[20,64], index: 1, kind: input, shape index: {}]
  %s2 = inlined_call_operand.vmem [shape: f32[1,64], index: 2, kind: input, shape index: {}]
  %s3 = inlined_call_operand.vmem [shape: f32[64,128], index: 3, kind: input, shape index: {}]
  %s4 = inlined_call_operand.hbm [shape: f32[32,128], index: 4, kind: input, shape index: {}]
  %s5 = inlined_call_operand.vmem [shape: f32[1,128], index: 5, kind: input, shape index: {}]
  %s6 = inlined_call_operand.vmem [shape: f32[32,4], index: 6, kind: input, shape index: {}]
  %s7 = inlined_call_operand.vmem [shape: f32[1,4], index: 7, kind: input, shape index: {}]
  %s8 = inlined_call_operand.hbm [shape: f32[2,4], index: 8, kind: output, shape index: {}]
  %s9 = sld [smem:[#allocation0]]
  $region50: #{tpu_custom_call.1} parent=0
    _
  %s11 = ssub.s32 1, %s9
  %s12 = scalar_select 0, %s11, %s9
  $region1: #{tpu_custom_call.1} parent=0
    #allocation2 [shape = 'u8[12288]{0}', space=vmem, size = 0x3000, scoped, tag = 'input window, operand 1, single buffered']
    #allocation3 [shape = 's32[1]{0}', space=sflag, size = 0x4, scoped, tag = 'scoped memory for tpu_custom_call.1']
    #allocation4 [shape = 's32[1]{0}', space=sflag, size = 0x4, scoped, tag = 'scoped memory for tpu_custom_call.1']
    #allocation5 [shape = 'u8[16384]{0}', space=vmem, size = 0x4000, scoped, tag = 'input window, operand 4, single buffered']
    #allocation6 [shape = 's32[1]{0}', space=sflag, size = 0x4, scoped, tag = 'scoped memory for tpu_custom_call.1']
    #allocation7 [shape = 'u8[1024]{0}', space=vmem, size = 0x400, scoped, tag = 'output window, operand 0, single buffered']
    %13 = vsyncpa [#allocation3], 0
    %14 = vsyncpa [#allocation6], 0
    %15 = vsyncpa [#allocation4], 0
    // Predicated region
    $region2: #{tpu_custom_call.1} parent=1 // pred_check
      _
    $region3: #{tpu_custom_call.1} parent=1 // pred_check_branch
      %17 = sbr.rel (0) target = $region5
    $region4: #{tpu_custom_call.1} parent=1 // pred_region
      _
    $region5: #{tpu_custom_call.1} parent=1 // pred_fallthru
      _
    // Predicated region
    $region6: #{tpu_custom_call.1} parent=1 // pred_check
      _
    $region7: #{tpu_custom_call.1} parent=1 // pred_check_branch
      %19 = sbr.rel (0) target = $region9
    $region8: #{tpu_custom_call.1} parent=1 // pred_region
      %s21 = ssub.s32 384, 384
      %22 = vsyncadd [#allocation3], %s21
      %s23 = sshll.u32 [#allocation2], 4
      %s24 = int_to_ptr.vmem [resolvable:$true] %s23
      %29 = dma.hbm_to_vmem [thread:$0]  %s1, 384, %s24, [#allocation3], 128, 128, 8
    $region9: #{tpu_custom_call.1} parent=1 // pred_fallthru
      _
    // Predicated region
    $region10: #{tpu_custom_call.1} parent=1 // pred_check
      _
    $region11: #{tpu_custom_call.1} parent=1 // pred_check_branch
      %31 = sbr.rel (0) target = $region13
    $region12: #{tpu_custom_call.1} parent=1 // pred_region
      _
    $region13: #{tpu_custom_call.1} parent=1 // pred_fallthru
      _
    // Predicated region
    $region14: #{tpu_custom_call.1} parent=1 // pred_check
      _
    $region15: #{tpu_custom_call.1} parent=1 // pred_check_branch
      %33 = sbr.rel (0) target = $region17
    $region16: #{tpu_custom_call.1} parent=1 // pred_region
      _
    $region17: #{tpu_custom_call.1} parent=1 // pred_fallthru
      _
    // Predicated region
    $region18: #{tpu_custom_call.1} parent=1 // pred_check
      _
    $region19: #{tpu_custom_call.1} parent=1 // pred_check_branch
      %35 = sbr.rel (0) target = $region21
    $region20: #{tpu_custom_call.1} parent=1 // pred_region
      %s37 = ssub.s32 512, 512
      %38 = vsyncadd [#allocation6], %s37
      %s39 = sshll.u32 [#allocation5], 4
      %s40 = int_to_ptr.vmem [resolvable:$true] %s39
      %45 = dma.hbm_to_vmem [thread:$0]  %s4, 512, %s40, [#allocation6], 128, 128, 8
    $region21: #{tpu_custom_call.1} parent=1 // pred_fallthru
      _
    // Predicated region
    $region22: #{tpu_custom_call.1} parent=1 // pred_check
      _
    $region23: #{tpu_custom_call.1} parent=1 // pred_check_branch
      %47 = sbr.rel (0) target = $region25
    $region24: #{tpu_custom_call.1} parent=1 // pred_region
      _
    $region25: #{tpu_custom_call.1} parent=1 // pred_fallthru
      _
    // Predicated region
    $region26: #{tpu_custom_call.1} parent=1 // pred_check
      _
    $region27: #{tpu_custom_call.1} parent=1 // pred_check_branch
      %49 = sbr.rel (0) target = $region29
    $region28: #{tpu_custom_call.1} parent=1 // pred_region
      _
    $region29: #{tpu_custom_call.1} parent=1 // pred_fallthru
      _
    // Predicated region
    $region30: #{tpu_custom_call.1} parent=1 // pred_check
      _
    $region31: #{tpu_custom_call.1} parent=1 // pred_check_branch
      %51 = sbr.rel (0) target = $region33
    $region32: #{tpu_custom_call.1} parent=1 // pred_region
      _
    $region33: #{tpu_custom_call.1} parent=1 // pred_fallthru
      _
    // Predicated region
    $region34: #{tpu_custom_call.1} parent=1 // pred_check
      _
    $region35: #{tpu_custom_call.1} parent=1 // pred_check_branch
      %53 = sbr.rel (0) target = $region37
    $region36: #{tpu_custom_call.1} parent=1 // pred_region
      %54 = dma.done [#allocation3], 384
    $region37: #{tpu_custom_call.1} parent=1 // pred_fallthru
      _
    // Predicated region
    $region38: #{tpu_custom_call.1} parent=1 // pred_check
      _
    $region39: #{tpu_custom_call.1} parent=1 // pred_check_branch
      %56 = sbr.rel (0) target = $region41
    $region40: #{tpu_custom_call.1} parent=1 // pred_region
      %57 = dma.done [#allocation6], 512
    $region41: #{tpu_custom_call.1} parent=1 // pred_fallthru
      _
    %v58 = vld [vmem:[%s0] sm:$0xff]
    %v59 = vld [vmem:[%s0 + $0x8] sm:$0xff]
    %v60 = vld [vmem:[%s0 + $0x10] sm:$0xff]
    %v61 = vld [vmem:[%s0 + $0x18] sm:$0xff]
    %v62 = vmul.f32 %v58, %v58
    %v63 = vmul.f32 %v59, %v59
    %v64 = vmul.f32 %v60, %v60
    %v65 = vmul.f32 %v61, %v61
    %vm66 = vcmask 31744
    %v67 = vsel %vm66, %v62, 0.0
    %v68 = vsel %vm66, %v63, 0.0
    %v69 = vadd.f32 %v67, %v68
    %v70 = vrot.slane %v69, 4
    %v71 = vadd.f32 %v69, %v70
    %v72 = vrot.slane %v71, 2
    %v73 = vadd.f32 %v71, %v72
    %v74 = vrot.slane %v73, 1
    %v75 = vadd.f32 %v73, %v74
    %v76 = vsel %vm66, %v64, 0.0
    %v77 = vsel %vm66, %v65, 0.0
    %v78 = vadd.f32 %v76, %v77
    %v79 = vrot.slane %v78, 4
    %v80 = vadd.f32 %v78, %v79
    %v81 = vrot.slane %v80, 2
    %v82 = vadd.f32 %v80, %v81
    %v83 = vrot.slane %v82, 1
    %v84 = vadd.f32 %v82, %v83
    %v85 = vmax.f32 %v75, 1e-24
    %v86 = vmax.f32 %v84, 1e-24
    %v87 = vrsqrt.pop %v85
    %v88 = vrsqrt.pop %v86
    %v89 = vmul.f32 %v58, %v87
    %v90 = vmul.f32 %v59, %v87
    %v91 = vmul.f32 %v60, %v88
    %v92 = vmul.f32 %v61, %v88
    %v95 = vrot.slane %v91, 7
    %vm96 = vcmask 1041409
    %v97 = vsel %vm96, %v95, %v89
    %v99 = vrot.slane %v89, 1
    %v100 = vsel %vm96, %v91, %v99
    %101 = vrot.lane.b32.xlu0 %v100, 4
    %v102 = vpop.permute.xlu0 %101
    %v104 = vrot.slane %v89, 2
    %v105 = vrot.slane %v91, 1
    %v106 = vsel %vm96, %v105, %v104
    %107 = vrot.lane.b32.xlu0 %v106, 8
    %v108 = vpop.permute.xlu0 %107
    %v110 = vrot.slane %v89, 3
    %v111 = vrot.slane %v91, 2
    %v112 = vsel %vm96, %v111, %v110
    %113 = vrot.lane.b32.xlu0 %v112, 12
    %v114 = vpop.permute.xlu0 %113
    %v116 = vrot.slane %v89, 4
    %v117 = vrot.slane %v91, 3
    %v118 = vsel %vm96, %v117, %v116
    %119 = vrot.lane.b32.xlu0 %v118, 16
    %v120 = vpop.permute.xlu0 %119
    %v122 = vsel %vm66, %v97, %v102
    %vm123 = vcmask 64512
    %v124 = vsel %vm123, %v122, %v108
    %vm125 = vcmask 97280
    %v126 = vsel %vm125, %v124, %v114
    %vm127 = vcmask 130048
    %v128 = vsel %vm127, %v126, %v120
    %vm129 = vcmask 1043459
    %v130 = vsel %vm129, %v95, %v89
    %v132 = vsel %vm129, %v91, %v99
    %133 = vrot.lane.b32.xlu0 %v132, 4
    %v134 = vpop.permute.xlu0 %133
    %v136 = vsel %vm129, %v105, %v104
    %137 = vrot.lane.b32.xlu0 %v136, 8
    %v138 = vpop.permute.xlu0 %137
    %v140 = vsel %vm129, %v111, %v110
    %141 = vrot.lane.b32.xlu0 %v140, 12
    %v142 = vpop.permute.xlu0 %141
    %v144 = vsel %vm129, %v117, %v116
    %145 = vrot.lane.b32.xlu0 %v144, 16
    %v146 = vpop.permute.xlu0 %145
    %v148 = vsel %vm66, %v130, %v134
    %v149 = vsel %vm123, %v148, %v138
    %v150 = vsel %vm125, %v149, %v142
    %v151 = vsel %vm127, %v150, %v146
    %vm152 = vcmask 1045509
    %v153 = vsel %vm152, %v95, %v89
    %v155 = vsel %vm152, %v91, %v99
    %156 = vrot.lane.b32.xlu0 %v155, 4
    %v157 = vpop.permute.xlu0 %156
    %v159 = vsel %vm152, %v105, %v104
    %160 = vrot.lane.b32.xlu0 %v159, 8
    %v161 = vpop.permute.xlu0 %160
    %v163 = vsel %vm152, %v111, %v110
    %164 = vrot.lane.b32.xlu0 %v163, 12
    %v165 = vpop.permute.xlu0 %164
    %v169 = vrot.slane %v90, 4
    %v170 = vrot.slane %v92, 3
    %v171 = vsel %vm152, %v170, %v169
    %172 = vrot.lane.b32.xlu0 %v171, 16
    %v173 = vpop.permute.xlu0 %172
    %v175 = vsel %vm66, %v153, %v157
    %v176 = vsel %vm123, %v175, %v161
    %v177 = vsel %vm125, %v176, %v165
    %v178 = vsel %vm127, %v177, %v173
    %vm179 = vcmask 1047559
    %v180 = vsel %vm179, %v95, %v89
    %v182 = vsel %vm179, %v91, %v99
    %183 = vrot.lane.b32.xlu0 %v182, 4
    %v184 = vpop.permute.xlu0 %183
    %v186 = vrot.slane %v90, 2
    %v187 = vrot.slane %v92, 1
    %v188 = vsel %vm179, %v187, %v186
    %189 = vrot.lane.b32.xlu0 %v188, 8
    %v190 = vpop.permute.xlu0 %189
    %v192 = vrot.slane %v90, 3
    %v193 = vrot.slane %v92, 2
    %v194 = vsel %vm179, %v193, %v192
    %195 = vrot.lane.b32.xlu0 %v194, 12
    %v196 = vpop.permute.xlu0 %195
    %v198 = vsel %vm179, %v170, %v169
    %199 = vrot.lane.b32.xlu0 %v198, 16
    %v200 = vpop.permute.xlu0 %199
    %v202 = vsel %vm66, %v180, %v184
    %v203 = vsel %vm123, %v202, %v190
    %v204 = vsel %vm125, %v203, %v196
    %v205 = vsel %vm127, %v204, %v200
    %v206 = vrot.slane %v92, 7
    %v207 = vsel %vm96, %v206, %v90
    %v209 = vrot.slane %v90, 1
    %v210 = vsel %vm96, %v92, %v209
    %211 = vrot.lane.b32.xlu0 %v210, 4
    %v212 = vpop.permute.xlu0 %211
    %v214 = vsel %vm96, %v187, %v186
    %215 = vrot.lane.b32.xlu0 %v214, 8
    %v216 = vpop.permute.xlu0 %215
    %v218 = vsel %vm96, %v193, %v192
    %219 = vrot.lane.b32.xlu0 %v218, 12
    %v220 = vpop.permute.xlu0 %219
    %v222 = vsel %vm96, %v170, %v169
    %223 = vrot.lane.b32.xlu0 %v222, 16
    %v224 = vpop.permute.xlu0 %223
    %v226 = vsel %vm66, %v207, %v212
    %v227 = vsel %vm123, %v226, %v216
    %v228 = vsel %vm125, %v227, %v220
    %v229 = vsel %vm127, %v228, %v224
    %v230 = vsel %vm129, %v206, %v90
    %v232 = vsel %vm129, %v92, %v209
    %233 = vrot.lane.b32.xlu0 %v232, 4
    %v234 = vpop.permute.xlu0 %233
    %v236 = vsel %vm129, %v187, %v186
    %237 = vrot.lane.b32.xlu0 %v236, 8
    %v238 = vpop.permute.xlu0 %237
    %v240 = vsel %vm129, %v193, %v192
    %241 = vrot.lane.b32.xlu0 %v240, 12
    %v242 = vpop.permute.xlu0 %241
    %v244 = vsel %vm129, %v170, %v169
    %245 = vrot.lane.b32.xlu0 %v244, 16
    %v246 = vpop.permute.xlu0 %245
    %v248 = vsel %vm66, %v230, %v234
    %v249 = vsel %vm123, %v248, %v238
    %v250 = vsel %vm125, %v249, %v242
    %v251 = vsel %vm127, %v250, %v246
    %vm252 = vcmask 1041408
    %v253 = vsel %vm252, %v128, %v151
    %vm254 = vcmask 1043456
    %v255 = vsel %vm254, %v253, %v178
    %vm256 = vcmask 1045504
    %v257 = vsel %vm256, %v255, %v205
    %v258 = vsel %vm252, %v229, %v251
    %v259 = vld [vmem:[#allocation2] sm:$0xff]
    %v260 = vld [vmem:[#allocation2 + $0x8] sm:$0xff]
    %v261 = vld [vmem:[#allocation2 + $0x10] sm:$0xf]
    %v262 = vld [vmem:[%s2] sm:$0x1]
    %v264 = vlaneseq
    %v265 = vshrl.u32 %v264, 7
    %v266 = vsub.s32 0, %v265
    %v267 = vrot.slane %v262, %v266
    %vm269 = vcmask 162816
    %v271 = vsel %vm269, %v257, 0
    %v274 = vsel %vm269, %v258, 0
    %v277 = vsel %vm254, %v261, 0
    %279 = vmatprep.subr.mxu0 0.0
    %280 = vmatpush1.msra.mxu0 0.0
    %281 = vmatprep.subr.mxu0 0.0
    %282 = vmatpush1.msra.mxu0 0.0
    %283 = vmatprep.subr.mxu0 0.0
    %284 = vmatpush1.msra.mxu0 0.0
    %285 = vmatprep.subr.mxu0 0.0
    %286 = vmatpush1.msra.mxu0 0.0
    %287 = vmatprep.subr.mxu0 0.0
    %288 = vmatpush1.msra.mxu0 0.0
    %289 = vmatprep.subr.mxu0 0.0
    %290 = vmatpush1.msra.mxu0 0.0
    %291 = vmatprep.subr.mxu0 0.0
    %292 = vmatpush1.msra.mxu0 0.0
    %293 = vmatprep.subr.mxu0 0.0
    %294 = vmatpush1.msra.mxu0 0.0
    %295 = vmatprep.subr.mxu0 0.0
    %296 = vmatpush1.msra.mxu0 0.0
    %297 = vmatprep.subr.mxu0 0.0
    %298 = vmatpush1.msra.mxu0 0.0
    %299 = vmatprep.subr.mxu0 0.0
    %300 = vmatpush1.msra.mxu0 0.0
    %301 = vmatprep.subr.mxu0 0.0
    %302 = vmatpush1.msra.mxu0 0.0
    %303 = vmatprep.subr.mxu0 0.0
    %304 = vmatpush1.msra.mxu0 0.0
    %305 = vmatprep.subr.mxu0 0.0
    %306 = vmatpush1.msra.mxu0 %v277
    %307 = vmatprep.subr.mxu0 0.0
    %308 = vmatpush1.msra.mxu0 %v260
    %309 = vmatprep.subr.mxu0 0.0
    %310 = vmatpush1.msra.mxu0 %v259
    %311 = vmatprep.subr.mxu0 0.0
    %312 = vmatpush2.msra.mxu0 0.0
    %313 = vmatprep.subr.mxu0 0.0
    %314 = vmatpush2.msra.mxu0 0.0
    %315 = vmatprep.subr.mxu0 0.0
    %316 = vmatpush2.msra.mxu0 0.0
    %317 = vmatprep.subr.mxu0 0.0
    %318 = vmatpush2.msra.mxu0 0.0
    %319 = vmatprep.subr.mxu0 0.0
    %320 = vmatpush2.msra.mxu0 0.0
    %321 = vmatprep.subr.mxu0 0.0
    %322 = vmatpush2.msra.mxu0 0.0
    %323 = vmatprep.subr.mxu0 0.0
    %324 = vmatpush2.msra.mxu0 0.0
    %325 = vmatprep.subr.mxu0 0.0
    %326 = vmatpush2.msra.mxu0 0.0
    %327 = vmatprep.subr.mxu0 0.0
    %328 = vmatpush2.msra.mxu0 0.0
    %329 = vmatprep.subr.mxu0 0.0
    %330 = vmatpush2.msra.mxu0 0.0
    %331 = vmatprep.subr.mxu0 0.0
    %332 = vmatpush2.msra.mxu0 0.0
    %333 = vmatprep.subr.mxu0 0.0
    %334 = vmatpush2.msra.mxu0 0.0
    %335 = vmatprep.subr.mxu0 0.0
    %336 = vmatpush2.msra.mxu0 0.0
    %337 = vmatprep.subr.mxu0 0.0
    %338 = vmatpush2.msra.mxu0 0.0
    %339 = vmatprep.subr.mxu0 0.0
    %340 = vmatpush2.msra.mxu0 0.0
    %341 = vmatprep.subr.mxu0 0.0
    %342 = vmatpush2.msra.mxu0 0.0
    %343 = vmatprep.mubr.f32.mxu0 0.0
    %344 = vmatmul.mubr.f32.gmra.mxu0 %v271
    %v345 = vpop.f32.mrf.mxu0
    %v346 = vadd.f32 %v267, %v345
    %v347 = vpop.f32.mrf.mxu0
    %348 = vmatprep.mubr.f32.mxu0 0.0
    %349 = vmatmul.mubr.f32.gmra.mxu0 %v274
    %v350 = vpop.f32.mrf.mxu0
    %v351 = vadd.f32 %v267, %v350
    %v352 = vpop.f32.mrf.mxu0
    %353 = vdwg.mxu0
    %v354 = vmax.f32 %v346, 0.0
    %v355 = vmax.f32 %v351, 0.0
    %v356 = vld [vmem:[%s3] sm:$0xff]
    %v357 = vld [vmem:[%s3 + $0x8] sm:$0xff]
    %v358 = vld [vmem:[%s3 + $0x10] sm:$0xff]
    %v359 = vld [vmem:[%s3 + $0x18] sm:$0xff]
    %v360 = vld [vmem:[%s3 + $0x20] sm:$0xff]
    %v361 = vld [vmem:[%s3 + $0x28] sm:$0xff]
    %v362 = vld [vmem:[%s3 + $0x30] sm:$0xff]
    %v363 = vld [vmem:[%s3 + $0x38] sm:$0xff]
    %vm364 = vcmask 523264
    %v366 = vsel %vm364, %v354, 0
    %v369 = vsel %vm364, %v355, 0
    %371 = vmatprep.subr.mxu0 0.0
    %372 = vmatpush1.msra.mxu0 0.0
    %373 = vmatprep.subr.mxu0 0.0
    %374 = vmatpush1.msra.mxu0 0.0
    %375 = vmatprep.subr.mxu0 0.0
    %376 = vmatpush1.msra.mxu0 0.0
    %377 = vmatprep.subr.mxu0 0.0
    %378 = vmatpush1.msra.mxu0 0.0
    %379 = vmatprep.subr.mxu0 0.0
    %380 = vmatpush1.msra.mxu0 0.0
    %381 = vmatprep.subr.mxu0 0.0
    %382 = vmatpush1.msra.mxu0 0.0
    %383 = vmatprep.subr.mxu0 0.0
    %384 = vmatpush1.msra.mxu0 0.0
    %385 = vmatprep.subr.mxu0 0.0
    %386 = vmatpush1.msra.mxu0 0.0
    %387 = vmatprep.subr.mxu0 0.0
    %388 = vmatpush1.msra.mxu0 %v363
    %389 = vmatprep.subr.mxu0 0.0
    %390 = vmatpush1.msra.mxu0 %v362
    %391 = vmatprep.subr.mxu0 0.0
    %392 = vmatpush1.msra.mxu0 %v361
    %393 = vmatprep.subr.mxu0 0.0
    %394 = vmatpush1.msra.mxu0 %v360
    %395 = vmatprep.subr.mxu0 0.0
    %396 = vmatpush1.msra.mxu0 %v359
    %397 = vmatprep.subr.mxu0 0.0
    %398 = vmatpush1.msra.mxu0 %v358
    %399 = vmatprep.subr.mxu0 0.0
    %400 = vmatpush1.msra.mxu0 %v357
    %401 = vmatprep.subr.mxu0 0.0
    %402 = vmatpush1.msra.mxu0 %v356
    %403 = vmatprep.subr.mxu0 0.0
    %404 = vmatpush2.msra.mxu0 0.0
    %405 = vmatprep.subr.mxu0 0.0
    %406 = vmatpush2.msra.mxu0 0.0
    %407 = vmatprep.subr.mxu0 0.0
    %408 = vmatpush2.msra.mxu0 0.0
    %409 = vmatprep.subr.mxu0 0.0
    %410 = vmatpush2.msra.mxu0 0.0
    %411 = vmatprep.subr.mxu0 0.0
    %412 = vmatpush2.msra.mxu0 0.0
    %413 = vmatprep.subr.mxu0 0.0
    %414 = vmatpush2.msra.mxu0 0.0
    %415 = vmatprep.subr.mxu0 0.0
    %416 = vmatpush2.msra.mxu0 0.0
    %417 = vmatprep.subr.mxu0 0.0
    %418 = vmatpush2.msra.mxu0 0.0
    %419 = vmatprep.subr.mxu0 0.0
    %420 = vmatpush2.msra.mxu0 0.0
    %421 = vmatprep.subr.mxu0 0.0
    %422 = vmatpush2.msra.mxu0 0.0
    %423 = vmatprep.subr.mxu0 0.0
    %424 = vmatpush2.msra.mxu0 0.0
    %425 = vmatprep.subr.mxu0 0.0
    %426 = vmatpush2.msra.mxu0 0.0
    %427 = vmatprep.subr.mxu0 0.0
    %428 = vmatpush2.msra.mxu0 0.0
    %429 = vmatprep.subr.mxu0 0.0
    %430 = vmatpush2.msra.mxu0 0.0
    %431 = vmatprep.subr.mxu0 0.0
    %432 = vmatpush2.msra.mxu0 0.0
    %433 = vmatprep.subr.mxu0 0.0
    %434 = vmatpush2.msra.mxu0 0.0
    %435 = vmatprep.mubr.f32.mxu0 0.0
    %436 = vmatmul.mubr.f32.gmra.mxu0 %v366
    %v437 = vpop.f32.mrf.mxu0
    %v438 = vadd.f32 0.0, %v437
    %v439 = vpop.f32.mrf.mxu0
    %440 = vmatprep.mubr.f32.mxu0 0.0
    %441 = vmatmul.mubr.f32.gmra.mxu0 %v369
    %v442 = vpop.f32.mrf.mxu0
    %v443 = vadd.f32 0.0, %v442
    %v444 = vpop.f32.mrf.mxu0
    %445 = vdwg.mxu0
    %v446 = vld [vmem:[#allocation5] sm:$0xff]
    %v447 = vld [vmem:[#allocation5 + $0x8] sm:$0xff]
    %v448 = vld [vmem:[#allocation5 + $0x10] sm:$0xff]
    %v449 = vld [vmem:[#allocation5 + $0x18] sm:$0xff]
    %v450 = vld [vmem:[%s5] sm:$0x1]
    %vm451 = vcmask 261120
    %v453 = vsel %vm451, 0.0, 0
    %455 = vmatprep.subr.mxu0 0.0
    %456 = vmatpush1.msra.mxu0 0.0
    %457 = vmatprep.subr.mxu0 0.0
    %458 = vmatpush1.msra.mxu0 0.0
    %459 = vmatprep.subr.mxu0 0.0
    %460 = vmatpush1.msra.mxu0 0.0
    %461 = vmatprep.subr.mxu0 0.0
    %462 = vmatpush1.msra.mxu0 0.0
    %463 = vmatprep.subr.mxu0 0.0
    %464 = vmatpush1.msra.mxu0 0.0
    %465 = vmatprep.subr.mxu0 0.0
    %466 = vmatpush1.msra.mxu0 0.0
    %467 = vmatprep.subr.mxu0 0.0
    %468 = vmatpush1.msra.mxu0 0.0
    %469 = vmatprep.subr.mxu0 0.0
    %470 = vmatpush1.msra.mxu0 0.0
    %471 = vmatprep.subr.mxu0 0.0
    %472 = vmatpush1.msra.mxu0 0.0
    %473 = vmatprep.subr.mxu0 0.0
    %474 = vmatpush1.msra.mxu0 0.0
    %475 = vmatprep.subr.mxu0 0.0
    %476 = vmatpush1.msra.mxu0 0.0
    %477 = vmatprep.subr.mxu0 0.0
    %478 = vmatpush1.msra.mxu0 0.0
    %479 = vmatprep.subr.mxu0 0.0
    %480 = vmatpush1.msra.mxu0 %v449
    %481 = vmatprep.subr.mxu0 0.0
    %482 = vmatpush1.msra.mxu0 %v448
    %483 = vmatprep.subr.mxu0 0.0
    %484 = vmatpush1.msra.mxu0 %v447
    %485 = vmatprep.subr.mxu0 0.0
    %486 = vmatpush1.msra.mxu0 %v446
    %487 = vmatprep.subr.mxu0 0.0
    %488 = vmatpush2.msra.mxu0 0.0
    %489 = vmatprep.subr.mxu0 0.0
    %490 = vmatpush2.msra.mxu0 0.0
    %491 = vmatprep.subr.mxu0 0.0
    %492 = vmatpush2.msra.mxu0 0.0
    %493 = vmatprep.subr.mxu0 0.0
    %494 = vmatpush2.msra.mxu0 0.0
    %495 = vmatprep.subr.mxu0 0.0
    %496 = vmatpush2.msra.mxu0 0.0
    %497 = vmatprep.subr.mxu0 0.0
    %498 = vmatpush2.msra.mxu0 0.0
    %499 = vmatprep.subr.mxu0 0.0
    %500 = vmatpush2.msra.mxu0 0.0
    %501 = vmatprep.subr.mxu0 0.0
    %502 = vmatpush2.msra.mxu0 0.0
    %503 = vmatprep.subr.mxu0 0.0
    %504 = vmatpush2.msra.mxu0 0.0
    %505 = vmatprep.subr.mxu0 0.0
    %506 = vmatpush2.msra.mxu0 0.0
    %507 = vmatprep.subr.mxu0 0.0
    %508 = vmatpush2.msra.mxu0 0.0
    %509 = vmatprep.subr.mxu0 0.0
    %510 = vmatpush2.msra.mxu0 0.0
    %511 = vmatprep.subr.mxu0 0.0
    %512 = vmatpush2.msra.mxu0 0.0
    %513 = vmatprep.subr.mxu0 0.0
    %514 = vmatpush2.msra.mxu0 0.0
    %515 = vmatprep.subr.mxu0 0.0
    %516 = vmatpush2.msra.mxu0 0.0
    %517 = vmatprep.subr.mxu0 0.0
    %518 = vmatpush2.msra.mxu0 0.0
    %519 = vmatprep.mubr.f32.mxu0 0.0
    %520 = vmatmul.mubr.f32.gmra.mxu0 %v453
    %v521 = vpop.f32.mrf.mxu0
    %v522 = vadd.f32 0.0, %v521
    %v523 = vpop.f32.mrf.mxu0
    %524 = vdwg.mxu0
    %v525 = vadd.f32 %v438, %v522
    %v527 = vlaneseq
    %v528 = vshrl.u32 %v527, 7
    %v529 = vsub.s32 0, %v528
    %v530 = vrot.slane %v450, %v529
    %v532 = vadd.f32 %v525, %v530
    %v533 = vxor.u32 %v532, 2147483648
    %v534 = vmul.f32 %v533, 1.442695
    %v535 = vpow.pop %v534
    %v536 = vadd.f32 %v535, 1.0
    %v537 = vrcp.pop %v536
    %v538 = vmul.f32 1.0, %v537
    %v539 = vtanh.pop %v532
    %v540 = vmul.f32 %v538, 0.0
    %542 = vrot.lane.b32.xlu0 %v539, 64
    %v543 = vpop.permute.xlu0 %542
    %v545 = vmul.f32 %v538, %v543
    %547 = vrot.lane.b32.xlu0 %v545, 32
    %v548 = vpop.permute.xlu0 %547
    %v550 = vadd.f32 %v540, %v548
    %v551 = vtanh.pop %v550
    %553 = vrot.lane.b32.xlu0 %v551, 64
    %v554 = vpop.permute.xlu0 %553
    %v556 = vmul.f32 %v538, %v554
    %558 = vrot.lane.b32.xlu0 %v556, 32
    %v559 = vpop.permute.xlu0 %558
    %v560 = vsel %vm451, %v559, 0
    %562 = vmatprep.subr.mxu0 0.0
    %563 = vmatpush1.msra.mxu0 0.0
    %564 = vmatprep.subr.mxu0 0.0
    %565 = vmatpush1.msra.mxu0 0.0
    %566 = vmatprep.subr.mxu0 0.0
    %567 = vmatpush1.msra.mxu0 0.0
    %568 = vmatprep.subr.mxu0 0.0
    %569 = vmatpush1.msra.mxu0 0.0
    %570 = vmatprep.subr.mxu0 0.0
    %571 = vmatpush1.msra.mxu0 0.0
    %572 = vmatprep.subr.mxu0 0.0
    %573 = vmatpush1.msra.mxu0 0.0
    %574 = vmatprep.subr.mxu0 0.0
    %575 = vmatpush1.msra.mxu0 0.0
    %576 = vmatprep.subr.mxu0 0.0
    %577 = vmatpush1.msra.mxu0 0.0
    %578 = vmatprep.subr.mxu0 0.0
    %579 = vmatpush1.msra.mxu0 0.0
    %580 = vmatprep.subr.mxu0 0.0
    %581 = vmatpush1.msra.mxu0 0.0
    %582 = vmatprep.subr.mxu0 0.0
    %583 = vmatpush1.msra.mxu0 0.0
    %584 = vmatprep.subr.mxu0 0.0
    %585 = vmatpush1.msra.mxu0 0.0
    %586 = vmatprep.subr.mxu0 0.0
    %587 = vmatpush1.msra.mxu0 %v449
    %588 = vmatprep.subr.mxu0 0.0
    %589 = vmatpush1.msra.mxu0 %v448
    %590 = vmatprep.subr.mxu0 0.0
    %591 = vmatpush1.msra.mxu0 %v447
    %592 = vmatprep.subr.mxu0 0.0
    %593 = vmatpush1.msra.mxu0 %v446
    %594 = vmatprep.subr.mxu0 0.0
    %595 = vmatpush2.msra.mxu0 0.0
    %596 = vmatprep.subr.mxu0 0.0
    %597 = vmatpush2.msra.mxu0 0.0
    %598 = vmatprep.subr.mxu0 0.0
    %599 = vmatpush2.msra.mxu0 0.0
    %600 = vmatprep.subr.mxu0 0.0
    %601 = vmatpush2.msra.mxu0 0.0
    %602 = vmatprep.subr.mxu0 0.0
    %603 = vmatpush2.msra.mxu0 0.0
    %604 = vmatprep.subr.mxu0 0.0
    %605 = vmatpush2.msra.mxu0 0.0
    %606 = vmatprep.subr.mxu0 0.0
    %607 = vmatpush2.msra.mxu0 0.0
    %608 = vmatprep.subr.mxu0 0.0
    %609 = vmatpush2.msra.mxu0 0.0
    %610 = vmatprep.subr.mxu0 0.0
    %611 = vmatpush2.msra.mxu0 0.0
    %612 = vmatprep.subr.mxu0 0.0
    %613 = vmatpush2.msra.mxu0 0.0
    %614 = vmatprep.subr.mxu0 0.0
    %615 = vmatpush2.msra.mxu0 0.0
    %616 = vmatprep.subr.mxu0 0.0
    %617 = vmatpush2.msra.mxu0 0.0
    %618 = vmatprep.subr.mxu0 0.0
    %619 = vmatpush2.msra.mxu0 0.0
    %620 = vmatprep.subr.mxu0 0.0
    %621 = vmatpush2.msra.mxu0 0.0
    %622 = vmatprep.subr.mxu0 0.0
    %623 = vmatpush2.msra.mxu0 0.0
    %624 = vmatprep.subr.mxu0 0.0
    %625 = vmatpush2.msra.mxu0 0.0
    %626 = vmatprep.mubr.f32.mxu0 0.0
    %627 = vmatmul.mubr.f32.gmra.mxu0 %v560
    %v628 = vpop.f32.mrf.mxu0
    %v629 = vadd.f32 0.0, %v628
    %v630 = vpop.f32.mrf.mxu0
    %631 = vdwg.mxu0
    %v633 = vrot.slane %v629, 6
    %v635 = vadd.f32 %v438, %v633
    %v636 = vadd.f32 %v635, %v530
    %v637 = vxor.u32 %v636, 2147483648
    %v638 = vmul.f32 %v637, 1.442695
    %v639 = vpow.pop %v638
    %v640 = vadd.f32 %v639, 1.0
    %v641 = vrcp.pop %v640
    %v642 = vmul.f32 1.0, %v641
    %v643 = vtanh.pop %v636
    %v645 = vrot.slane %v550, 6
    %v647 = vmul.f32 %v642, %v645
    %649 = vrot.lane.b32.xlu0 %v643, 64
    %v650 = vpop.permute.xlu0 %649
    %v652 = vmul.f32 %v642, %v650
    %654 = vrot.lane.b32.xlu0 %v652, 32
    %v655 = vpop.permute.xlu0 %654
    %v657 = vadd.f32 %v647, %v655
    %v658 = vtanh.pop %v657
    %660 = vrot.lane.b32.xlu0 %v658, 64
    %v661 = vpop.permute.xlu0 %660
    %v663 = vmul.f32 %v642, %v661
    %v665 = vrot.slane %v663, 2
    %666 = vrot.lane.b32.xlu0 %v665, 32
    %v667 = vpop.permute.xlu0 %666
    %v668 = vsel %vm451, %v667, 0
    %670 = vmatprep.subr.mxu0 0.0
    %671 = vmatpush1.msra.mxu0 0.0
    %672 = vmatprep.subr.mxu0 0.0
    %673 = vmatpush1.msra.mxu0 0.0
    %674 = vmatprep.subr.mxu0 0.0
    %675 = vmatpush1.msra.mxu0 0.0
    %676 = vmatprep.subr.mxu0 0.0
    %677 = vmatpush1.msra.mxu0 0.0
    %678 = vmatprep.subr.mxu0 0.0
    %679 = vmatpush1.msra.mxu0 0.0
    %680 = vmatprep.subr.mxu0 0.0
    %681 = vmatpush1.msra.mxu0 0.0
    %682 = vmatprep.subr.mxu0 0.0
    %683 = vmatpush1.msra.mxu0 0.0
    %684 = vmatprep.subr.mxu0 0.0
    %685 = vmatpush1.msra.mxu0 0.0
    %686 = vmatprep.subr.mxu0 0.0
    %687 = vmatpush1.msra.mxu0 0.0
    %688 = vmatprep.subr.mxu0 0.0
    %689 = vmatpush1.msra.mxu0 0.0
    %690 = vmatprep.subr.mxu0 0.0
    %691 = vmatpush1.msra.mxu0 0.0
    %692 = vmatprep.subr.mxu0 0.0
    %693 = vmatpush1.msra.mxu0 0.0
    %694 = vmatprep.subr.mxu0 0.0
    %695 = vmatpush1.msra.mxu0 %v449
    %696 = vmatprep.subr.mxu0 0.0
    %697 = vmatpush1.msra.mxu0 %v448
    %698 = vmatprep.subr.mxu0 0.0
    %699 = vmatpush1.msra.mxu0 %v447
    %700 = vmatprep.subr.mxu0 0.0
    %701 = vmatpush1.msra.mxu0 %v446
    %702 = vmatprep.subr.mxu0 0.0
    %703 = vmatpush2.msra.mxu0 0.0
    %704 = vmatprep.subr.mxu0 0.0
    %705 = vmatpush2.msra.mxu0 0.0
    %706 = vmatprep.subr.mxu0 0.0
    %707 = vmatpush2.msra.mxu0 0.0
    %708 = vmatprep.subr.mxu0 0.0
    %709 = vmatpush2.msra.mxu0 0.0
    %710 = vmatprep.subr.mxu0 0.0
    %711 = vmatpush2.msra.mxu0 0.0
    %712 = vmatprep.subr.mxu0 0.0
    %713 = vmatpush2.msra.mxu0 0.0
    %714 = vmatprep.subr.mxu0 0.0
    %715 = vmatpush2.msra.mxu0 0.0
    %716 = vmatprep.subr.mxu0 0.0
    %717 = vmatpush2.msra.mxu0 0.0
    %718 = vmatprep.subr.mxu0 0.0
    %719 = vmatpush2.msra.mxu0 0.0
    %720 = vmatprep.subr.mxu0 0.0
    %721 = vmatpush2.msra.mxu0 0.0
    %722 = vmatprep.subr.mxu0 0.0
    %723 = vmatpush2.msra.mxu0 0.0
    %724 = vmatprep.subr.mxu0 0.0
    %725 = vmatpush2.msra.mxu0 0.0
    %726 = vmatprep.subr.mxu0 0.0
    %727 = vmatpush2.msra.mxu0 0.0
    %728 = vmatprep.subr.mxu0 0.0
    %729 = vmatpush2.msra.mxu0 0.0
    %730 = vmatprep.subr.mxu0 0.0
    %731 = vmatpush2.msra.mxu0 0.0
    %732 = vmatprep.subr.mxu0 0.0
    %733 = vmatpush2.msra.mxu0 0.0
    %734 = vmatprep.mubr.f32.mxu0 0.0
    %735 = vmatmul.mubr.f32.gmra.mxu0 %v668
    %v736 = vpop.f32.mrf.mxu0
    %v737 = vadd.f32 0.0, %v736
    %v738 = vpop.f32.mrf.mxu0
    %739 = vdwg.mxu0
    %v741 = vrot.slane %v737, 4
    %v743 = vadd.f32 %v438, %v741
    %v744 = vadd.f32 %v743, %v530
    %v745 = vxor.u32 %v744, 2147483648
    %v746 = vmul.f32 %v745, 1.442695
    %v747 = vpow.pop %v746
    %v748 = vadd.f32 %v747, 1.0
    %v749 = vrcp.pop %v748
    %v750 = vmul.f32 1.0, %v749
    %v751 = vtanh.pop %v744
    %v753 = vrot.slane %v657, 6
    %v755 = vmul.f32 %v750, %v753
    %757 = vrot.lane.b32.xlu0 %v751, 64
    %v758 = vpop.permute.xlu0 %757
    %v760 = vmul.f32 %v750, %v758
    %762 = vrot.lane.b32.xlu0 %v760, 32
    %v763 = vpop.permute.xlu0 %762
    %v765 = vadd.f32 %v755, %v763
    %v766 = vtanh.pop %v765
    %768 = vrot.lane.b32.xlu0 %v766, 64
    %v769 = vpop.permute.xlu0 %768
    %v771 = vmul.f32 %v750, %v769
    %v773 = vrot.slane %v771, 4
    %774 = vrot.lane.b32.xlu0 %v773, 32
    %v775 = vpop.permute.xlu0 %774
    %v776 = vsel %vm451, %v775, 0
    %778 = vmatprep.subr.mxu0 0.0
    %779 = vmatpush1.msra.mxu0 0.0
    %780 = vmatprep.subr.mxu0 0.0
    %781 = vmatpush1.msra.mxu0 0.0
    %782 = vmatprep.subr.mxu0 0.0
    %783 = vmatpush1.msra.mxu0 0.0
    %784 = vmatprep.subr.mxu0 0.0
    %785 = vmatpush1.msra.mxu0 0.0
    %786 = vmatprep.subr.mxu0 0.0
    %787 = vmatpush1.msra.mxu0 0.0
    %788 = vmatprep.subr.mxu0 0.0
    %789 = vmatpush1.msra.mxu0 0.0
    %790 = vmatprep.subr.mxu0 0.0
    %791 = vmatpush1.msra.mxu0 0.0
    %792 = vmatprep.subr.mxu0 0.0
    %793 = vmatpush1.msra.mxu0 0.0
    %794 = vmatprep.subr.mxu0 0.0
    %795 = vmatpush1.msra.mxu0 0.0
    %796 = vmatprep.subr.mxu0 0.0
    %797 = vmatpush1.msra.mxu0 0.0
    %798 = vmatprep.subr.mxu0 0.0
    %799 = vmatpush1.msra.mxu0 0.0
    %800 = vmatprep.subr.mxu0 0.0
    %801 = vmatpush1.msra.mxu0 0.0
    %802 = vmatprep.subr.mxu0 0.0
    %803 = vmatpush1.msra.mxu0 %v449
    %804 = vmatprep.subr.mxu0 0.0
    %805 = vmatpush1.msra.mxu0 %v448
    %806 = vmatprep.subr.mxu0 0.0
    %807 = vmatpush1.msra.mxu0 %v447
    %808 = vmatprep.subr.mxu0 0.0
    %809 = vmatpush1.msra.mxu0 %v446
    %810 = vmatprep.subr.mxu0 0.0
    %811 = vmatpush2.msra.mxu0 0.0
    %812 = vmatprep.subr.mxu0 0.0
    %813 = vmatpush2.msra.mxu0 0.0
    %814 = vmatprep.subr.mxu0 0.0
    %815 = vmatpush2.msra.mxu0 0.0
    %816 = vmatprep.subr.mxu0 0.0
    %817 = vmatpush2.msra.mxu0 0.0
    %818 = vmatprep.subr.mxu0 0.0
    %819 = vmatpush2.msra.mxu0 0.0
    %820 = vmatprep.subr.mxu0 0.0
    %821 = vmatpush2.msra.mxu0 0.0
    %822 = vmatprep.subr.mxu0 0.0
    %823 = vmatpush2.msra.mxu0 0.0
    %824 = vmatprep.subr.mxu0 0.0
    %825 = vmatpush2.msra.mxu0 0.0
    %826 = vmatprep.subr.mxu0 0.0
    %827 = vmatpush2.msra.mxu0 0.0
    %828 = vmatprep.subr.mxu0 0.0
    %829 = vmatpush2.msra.mxu0 0.0
    %830 = vmatprep.subr.mxu0 0.0
    %831 = vmatpush2.msra.mxu0 0.0
    %832 = vmatprep.subr.mxu0 0.0
    %833 = vmatpush2.msra.mxu0 0.0
    %834 = vmatprep.subr.mxu0 0.0
    %835 = vmatpush2.msra.mxu0 0.0
    %836 = vmatprep.subr.mxu0 0.0
    %837 = vmatpush2.msra.mxu0 0.0
    %838 = vmatprep.subr.mxu0 0.0
    %839 = vmatpush2.msra.mxu0 0.0
    %840 = vmatprep.subr.mxu0 0.0
    %841 = vmatpush2.msra.mxu0 0.0
    %842 = vmatprep.mubr.f32.mxu0 0.0
    %843 = vmatmul.mubr.f32.gmra.mxu0 %v776
    %v844 = vpop.f32.mrf.mxu0
    %v845 = vadd.f32 0.0, %v844
    %v846 = vpop.f32.mrf.mxu0
    %847 = vdwg.mxu0
    %v849 = vrot.slane %v845, 2
    %v851 = vadd.f32 %v438, %v849
    %v852 = vadd.f32 %v851, %v530
    %v853 = vxor.u32 %v852, 2147483648
    %v854 = vmul.f32 %v853, 1.442695
    %v855 = vpow.pop %v854
    %v856 = vadd.f32 %v855, 1.0
    %v857 = vrcp.pop %v856
    %v858 = vmul.f32 1.0, %v857
    %v859 = vtanh.pop %v852
    %v861 = vrot.slane %v765, 6
    %v863 = vmul.f32 %v858, %v861
    %865 = vrot.lane.b32.xlu0 %v859, 64
    %v866 = vpop.permute.xlu0 %865
    %v868 = vmul.f32 %v858, %v866
    %870 = vrot.lane.b32.xlu0 %v868, 32
    %v871 = vpop.permute.xlu0 %870
    %v873 = vadd.f32 %v863, %v871
    %v874 = vtanh.pop %v873
    %876 = vrot.lane.b32.xlu0 %v874, 64
    %v877 = vpop.permute.xlu0 %876
    %v879 = vmul.f32 %v858, %v877
    %v881 = vrot.slane %v879, 6
    %882 = vrot.lane.b32.xlu0 %v881, 32
    %v883 = vpop.permute.xlu0 %882
    %v884 = vsel %vm451, %v883, 0
    %886 = vmatprep.subr.mxu0 0.0
    %887 = vmatpush1.msra.mxu0 0.0
    %888 = vmatprep.subr.mxu0 0.0
    %889 = vmatpush1.msra.mxu0 0.0
    %890 = vmatprep.subr.mxu0 0.0
    %891 = vmatpush1.msra.mxu0 0.0
    %892 = vmatprep.subr.mxu0 0.0
    %893 = vmatpush1.msra.mxu0 0.0
    %894 = vmatprep.subr.mxu0 0.0
    %895 = vmatpush1.msra.mxu0 0.0
    %896 = vmatprep.subr.mxu0 0.0
    %897 = vmatpush1.msra.mxu0 0.0
    %898 = vmatprep.subr.mxu0 0.0
    %899 = vmatpush1.msra.mxu0 0.0
    %900 = vmatprep.subr.mxu0 0.0
    %901 = vmatpush1.msra.mxu0 0.0
    %902 = vmatprep.subr.mxu0 0.0
    %903 = vmatpush1.msra.mxu0 0.0
    %904 = vmatprep.subr.mxu0 0.0
    %905 = vmatpush1.msra.mxu0 0.0
    %906 = vmatprep.subr.mxu0 0.0
    %907 = vmatpush1.msra.mxu0 0.0
    %908 = vmatprep.subr.mxu0 0.0
    %909 = vmatpush1.msra.mxu0 0.0
    %910 = vmatprep.subr.mxu0 0.0
    %911 = vmatpush1.msra.mxu0 %v449
    %912 = vmatprep.subr.mxu0 0.0
    %913 = vmatpush1.msra.mxu0 %v448
    %914 = vmatprep.subr.mxu0 0.0
    %915 = vmatpush1.msra.mxu0 %v447
    %916 = vmatprep.subr.mxu0 0.0
    %917 = vmatpush1.msra.mxu0 %v446
    %918 = vmatprep.subr.mxu0 0.0
    %919 = vmatpush2.msra.mxu0 0.0
    %920 = vmatprep.subr.mxu0 0.0
    %921 = vmatpush2.msra.mxu0 0.0
    %922 = vmatprep.subr.mxu0 0.0
    %923 = vmatpush2.msra.mxu0 0.0
    %924 = vmatprep.subr.mxu0 0.0
    %925 = vmatpush2.msra.mxu0 0.0
    %926 = vmatprep.subr.mxu0 0.0
    %927 = vmatpush2.msra.mxu0 0.0
    %928 = vmatprep.subr.mxu0 0.0
    %929 = vmatpush2.msra.mxu0 0.0
    %930 = vmatprep.subr.mxu0 0.0
    %931 = vmatpush2.msra.mxu0 0.0
    %932 = vmatprep.subr.mxu0 0.0
    %933 = vmatpush2.msra.mxu0 0.0
    %934 = vmatprep.subr.mxu0 0.0
    %935 = vmatpush2.msra.mxu0 0.0
    %936 = vmatprep.subr.mxu0 0.0
    %937 = vmatpush2.msra.mxu0 0.0
    %938 = vmatprep.subr.mxu0 0.0
    %939 = vmatpush2.msra.mxu0 0.0
    %940 = vmatprep.subr.mxu0 0.0
    %941 = vmatpush2.msra.mxu0 0.0
    %942 = vmatprep.subr.mxu0 0.0
    %943 = vmatpush2.msra.mxu0 0.0
    %944 = vmatprep.subr.mxu0 0.0
    %945 = vmatpush2.msra.mxu0 0.0
    %946 = vmatprep.subr.mxu0 0.0
    %947 = vmatpush2.msra.mxu0 0.0
    %948 = vmatprep.subr.mxu0 0.0
    %949 = vmatpush2.msra.mxu0 0.0
    %950 = vmatprep.mubr.f32.mxu0 0.0
    %951 = vmatmul.mubr.f32.gmra.mxu0 %v884
    %v952 = vpop.f32.mrf.mxu0
    %v953 = vadd.f32 0.0, %v952
    %v954 = vpop.f32.mrf.mxu0
    %955 = vdwg.mxu0
    %v956 = vadd.f32 %v443, %v953
    %v957 = vadd.f32 %v956, %v530
    %v958 = vxor.u32 %v957, 2147483648
    %v959 = vmul.f32 %v958, 1.442695
    %v960 = vpow.pop %v959
    %v961 = vadd.f32 %v960, 1.0
    %v962 = vrcp.pop %v961
    %v963 = vmul.f32 1.0, %v962
    %v964 = vtanh.pop %v957
    %v966 = vrot.slane %v873, 6
    %v968 = vmul.f32 %v963, %v966
    %970 = vrot.lane.b32.xlu0 %v964, 64
    %v971 = vpop.permute.xlu0 %970
    %v973 = vmul.f32 %v963, %v971
    %975 = vrot.lane.b32.xlu0 %v973, 32
    %v976 = vpop.permute.xlu0 %975
    %v978 = vadd.f32 %v968, %v976
    %v979 = vtanh.pop %v978
    %981 = vrot.lane.b32.xlu0 %v979, 64
    %v982 = vpop.permute.xlu0 %981
    %v984 = vmul.f32 %v963, %v982
    %986 = vrot.lane.b32.xlu0 %v984, 32
    %v987 = vpop.permute.xlu0 %986
    %v988 = vsel %vm451, %v987, 0
    %990 = vmatprep.subr.mxu0 0.0
    %991 = vmatpush1.msra.mxu0 0.0
    %992 = vmatprep.subr.mxu0 0.0
    %993 = vmatpush1.msra.mxu0 0.0
    %994 = vmatprep.subr.mxu0 0.0
    %995 = vmatpush1.msra.mxu0 0.0
    %996 = vmatprep.subr.mxu0 0.0
    %997 = vmatpush1.msra.mxu0 0.0
    %998 = vmatprep.subr.mxu0 0.0
    %999 = vmatpush1.msra.mxu0 0.0
    %1000 = vmatprep.subr.mxu0 0.0
    %1001 = vmatpush1.msra.mxu0 0.0
    %1002 = vmatprep.subr.mxu0 0.0
    %1003 = vmatpush1.msra.mxu0 0.0
    %1004 = vmatprep.subr.mxu0 0.0
    %1005 = vmatpush1.msra.mxu0 0.0
    %1006 = vmatprep.subr.mxu0 0.0
    %1007 = vmatpush1.msra.mxu0 0.0
    %1008 = vmatprep.subr.mxu0 0.0
    %1009 = vmatpush1.msra.mxu0 0.0
    %1010 = vmatprep.subr.mxu0 0.0
    %1011 = vmatpush1.msra.mxu0 0.0
    %1012 = vmatprep.subr.mxu0 0.0
    %1013 = vmatpush1.msra.mxu0 0.0
    %1014 = vmatprep.subr.mxu0 0.0
    %1015 = vmatpush1.msra.mxu0 %v449
    %1016 = vmatprep.subr.mxu0 0.0
    %1017 = vmatpush1.msra.mxu0 %v448
    %1018 = vmatprep.subr.mxu0 0.0
    %1019 = vmatpush1.msra.mxu0 %v447
    %1020 = vmatprep.subr.mxu0 0.0
    %1021 = vmatpush1.msra.mxu0 %v446
    %1022 = vmatprep.subr.mxu0 0.0
    %1023 = vmatpush2.msra.mxu0 0.0
    %1024 = vmatprep.subr.mxu0 0.0
    %1025 = vmatpush2.msra.mxu0 0.0
    %1026 = vmatprep.subr.mxu0 0.0
    %1027 = vmatpush2.msra.mxu0 0.0
    %1028 = vmatprep.subr.mxu0 0.0
    %1029 = vmatpush2.msra.mxu0 0.0
    %1030 = vmatprep.subr.mxu0 0.0
    %1031 = vmatpush2.msra.mxu0 0.0
    %1032 = vmatprep.subr.mxu0 0.0
    %1033 = vmatpush2.msra.mxu0 0.0
    %1034 = vmatprep.subr.mxu0 0.0
    %1035 = vmatpush2.msra.mxu0 0.0
    %1036 = vmatprep.subr.mxu0 0.0
    %1037 = vmatpush2.msra.mxu0 0.0
    %1038 = vmatprep.subr.mxu0 0.0
    %1039 = vmatpush2.msra.mxu0 0.0
    %1040 = vmatprep.subr.mxu0 0.0
    %1041 = vmatpush2.msra.mxu0 0.0
    %1042 = vmatprep.subr.mxu0 0.0
    %1043 = vmatpush2.msra.mxu0 0.0
    %1044 = vmatprep.subr.mxu0 0.0
    %1045 = vmatpush2.msra.mxu0 0.0
    %1046 = vmatprep.subr.mxu0 0.0
    %1047 = vmatpush2.msra.mxu0 0.0
    %1048 = vmatprep.subr.mxu0 0.0
    %1049 = vmatpush2.msra.mxu0 0.0
    %1050 = vmatprep.subr.mxu0 0.0
    %1051 = vmatpush2.msra.mxu0 0.0
    %1052 = vmatprep.subr.mxu0 0.0
    %1053 = vmatpush2.msra.mxu0 0.0
    %1054 = vmatprep.mubr.f32.mxu0 0.0
    %1055 = vmatmul.mubr.f32.gmra.mxu0 %v988
    %v1056 = vpop.f32.mrf.mxu0
    %v1057 = vadd.f32 0.0, %v1056
    %v1058 = vpop.f32.mrf.mxu0
    %1059 = vdwg.mxu0
    %v1061 = vrot.slane %v1057, 6
    %v1063 = vadd.f32 %v443, %v1061
    %v1064 = vadd.f32 %v1063, %v530
    %v1065 = vxor.u32 %v1064, 2147483648
    %v1066 = vmul.f32 %v1065, 1.442695
    %v1067 = vpow.pop %v1066
    %v1068 = vadd.f32 %v1067, 1.0
    %v1069 = vrcp.pop %v1068
    %v1070 = vmul.f32 1.0, %v1069
    %v1071 = vtanh.pop %v1064
    %v1073 = vrot.slane %v978, 6
    %v1075 = vmul.f32 %v1070, %v1073
    %1077 = vrot.lane.b32.xlu0 %v1071, 64
    %v1078 = vpop.permute.xlu0 %1077
    %v1080 = vmul.f32 %v1070, %v1078
    %1082 = vrot.lane.b32.xlu0 %v1080, 32
    %v1083 = vpop.permute.xlu0 %1082
    %v1085 = vadd.f32 %v1075, %v1083
    %v1086 = vtanh.pop %v1085
    %1088 = vrot.lane.b32.xlu0 %v1086, 64
    %v1089 = vpop.permute.xlu0 %1088
    %v1091 = vmul.f32 %v1070, %v1089
    %v1092 = vld [vmem:[%s6] sm:$0xff]
    %v1093 = vld [vmem:[%s6 + $0x8] sm:$0xff]
    %v1094 = vld [vmem:[%s6 + $0x10] sm:$0xff]
    %v1095 = vld [vmem:[%s6 + $0x18] sm:$0xff]
    %v1096 = vld [vmem:[%s7] sm:$0x1]
    %v1098 = vlaneseq
    %v1099 = vshrl.u32 %v1098, 7
    %v1100 = vsub.s32 0, %v1099
    %v1101 = vrot.slane %v1096, %v1100
    %v1104 = vrot.slane %v1091, 2
    %1105 = vrot.lane.b32.xlu0 %v1104, 32
    %v1106 = vpop.permute.xlu0 %1105
    %v1107 = vsel %vm451, %v1106, 0
    %1109 = vmatprep.subr.mxu0 0.0
    %1110 = vmatpush1.msra.mxu0 0.0
    %1111 = vmatprep.subr.mxu0 0.0
    %1112 = vmatpush1.msra.mxu0 0.0
    %1113 = vmatprep.subr.mxu0 0.0
    %1114 = vmatpush1.msra.mxu0 0.0
    %1115 = vmatprep.subr.mxu0 0.0
    %1116 = vmatpush1.msra.mxu0 0.0
    %1117 = vmatprep.subr.mxu0 0.0
    %1118 = vmatpush1.msra.mxu0 0.0
    %1119 = vmatprep.subr.mxu0 0.0
    %1120 = vmatpush1.msra.mxu0 0.0
    %1121 = vmatprep.subr.mxu0 0.0
    %1122 = vmatpush1.msra.mxu0 0.0
    %1123 = vmatprep.subr.mxu0 0.0
    %1124 = vmatpush1.msra.mxu0 0.0
    %1125 = vmatprep.subr.mxu0 0.0
    %1126 = vmatpush1.msra.mxu0 0.0
    %1127 = vmatprep.subr.mxu0 0.0
    %1128 = vmatpush1.msra.mxu0 0.0
    %1129 = vmatprep.subr.mxu0 0.0
    %1130 = vmatpush1.msra.mxu0 0.0
    %1131 = vmatprep.subr.mxu0 0.0
    %1132 = vmatpush1.msra.mxu0 0.0
    %1133 = vmatprep.subr.mxu0 0.0
    %1134 = vmatpush1.msra.mxu0 %v1095
    %1135 = vmatprep.subr.mxu0 0.0
    %1136 = vmatpush1.msra.mxu0 %v1094
    %1137 = vmatprep.subr.mxu0 0.0
    %1138 = vmatpush1.msra.mxu0 %v1093
    %1139 = vmatprep.subr.mxu0 0.0
    %1140 = vmatpush1.msra.mxu0 %v1092
    %1141 = vmatprep.subr.mxu0 0.0
    %1142 = vmatpush2.msra.mxu0 0.0
    %1143 = vmatprep.subr.mxu0 0.0
    %1144 = vmatpush2.msra.mxu0 0.0
    %1145 = vmatprep.subr.mxu0 0.0
    %1146 = vmatpush2.msra.mxu0 0.0
    %1147 = vmatprep.subr.mxu0 0.0
    %1148 = vmatpush2.msra.mxu0 0.0
    %1149 = vmatprep.subr.mxu0 0.0
    %1150 = vmatpush2.msra.mxu0 0.0
    %1151 = vmatprep.subr.mxu0 0.0
    %1152 = vmatpush2.msra.mxu0 0.0
    %1153 = vmatprep.subr.mxu0 0.0
    %1154 = vmatpush2.msra.mxu0 0.0
    %1155 = vmatprep.subr.mxu0 0.0
    %1156 = vmatpush2.msra.mxu0 0.0
    %1157 = vmatprep.subr.mxu0 0.0
    %1158 = vmatpush2.msra.mxu0 0.0
    %1159 = vmatprep.subr.mxu0 0.0
    %1160 = vmatpush2.msra.mxu0 0.0
    %1161 = vmatprep.subr.mxu0 0.0
    %1162 = vmatpush2.msra.mxu0 0.0
    %1163 = vmatprep.subr.mxu0 0.0
    %1164 = vmatpush2.msra.mxu0 0.0
    %1165 = vmatprep.subr.mxu0 0.0
    %1166 = vmatpush2.msra.mxu0 0.0
    %1167 = vmatprep.subr.mxu0 0.0
    %1168 = vmatpush2.msra.mxu0 0.0
    %1169 = vmatprep.subr.mxu0 0.0
    %1170 = vmatpush2.msra.mxu0 0.0
    %1171 = vmatprep.subr.mxu0 0.0
    %1172 = vmatpush2.msra.mxu0 0.0
    %1173 = vmatprep.mubr.f32.mxu0 0.0
    %1174 = vmatmul.mubr.f32.gmra.mxu0 %v1107
    %v1175 = vpop.f32.mrf.mxu0
    %v1176 = vadd.f32 %v1101, %v1175
    %v1177 = vpop.f32.mrf.mxu0
    %1178 = vdwg.mxu0
    %vm1179 = vcmask 25600
    %1180 = vst.msk [vmem:[#allocation7] sm:$0x3] %vm1179, %v1176
    // Predicated region
    $region42: #{tpu_custom_call.1} parent=1 // pred_check
      _
    $region43: #{tpu_custom_call.1} parent=1 // pred_check_branch
      %1182 = sbr.rel (0) target = $region45
    $region44: #{tpu_custom_call.1} parent=1 // pred_region
      %s1184 = ssub.s32 32, 32
      %1185 = vsyncadd [#allocation4], %s1184
      %s1187 = sshll.u32 [#allocation7], 4
      %s1188 = int_to_ptr.vmem [resolvable:$true] %s1187
      %1190 = dma.vmem_to_hbm [thread:$0]  %s1188, 32, %s8, [#allocation4]
    $region45: #{tpu_custom_call.1} parent=1 // pred_fallthru
      _
    // Predicated region
    $region46: #{tpu_custom_call.1} parent=1 // pred_check
      _
    $region47: #{tpu_custom_call.1} parent=1 // pred_check_branch
      %1192 = sbr.rel (0) target = $region49
    $region48: #{tpu_custom_call.1} parent=1 // pred_region
      %1193 = dma.done [#allocation4], 32
    $region49: #{tpu_custom_call.1} parent=1 // pred_fallthru
      _
    %1194 = vsyncpa [#allocation3], 1
    %1195 = vsyncpa [#allocation6], 1
    %1196 = vsyncpa [#allocation4], 1

</llo_original>
